<compile_context>
chip_gen: v6e
topology: v6e:2x2x1
jax: 0.10.0
libtpu: 0.0.40
codegen_flags: <defaults>
</compile_context>

<pallas_src>
import functools

import jax
import jax.numpy as jnp
from jax.experimental import pallas as pl
from jax.experimental.pallas import tpu as pltpu


# ----------------------------------------------------------------------------
# Fused Pallas kernel: one batch element per grid step.
# Layout inside the kernel: activations are (H, W*C) with lane index w*C + c.
# ----------------------------------------------------------------------------
def _fused_block_kernel(x_ref, b1_ref, b2_ref, b3_ref,
                        bias1_ref, bias2_ref, bias3_ref, alpha_ref,
                        o_ref, cv1, cv2, *, H, W, Cin, Cout):
    WCo = W * Cout

    def conv_stage(cv_ref, B_ref, bias_ref, alpha, residual=None):
        # y[h, w*Cout+co] = bias[co] + sum_kh (canvas[h+kh, :] @ B[kh])[w*Cout+co]
        kh_taps = B_ref.shape[0]
        acc = jnp.zeros((H, WCo), jnp.float32) + bias_ref[...]   # (1,WCo) bcast
        for kh in range(kh_taps):                                # static, <= 5
            acc = acc + jnp.dot(cv_ref[pl.ds(kh, H), :], B_ref[kh],
                                preferred_element_type=jnp.float32)
        if residual is not None:
            acc = acc + residual
        # PReLU with a single shared parameter (nn.PReLU() default)
        return jnp.where(acc > 0, acc, alpha * acc)

    # ---- stage 1: 5x5 conv, pad=2.  Canvas has 2 zero rows top/bottom. ----
    cv1[...] = jnp.zeros_like(cv1)
    cv1[pl.ds(2, H), :] = x_ref[0]                       # (H, W*Cin) interior
    x1 = conv_stage(cv1, b1_ref, bias1_ref, alpha_ref[0])          # residual

    # ---- stage 2: 3x3 conv, pad=1.  Canvas has 1 zero row top/bottom. ----
    cv2[...] = jnp.zeros_like(cv2)
    cv2[pl.ds(1, H), :] = x1
    h2 = conv_stage(cv2, b2_ref, bias2_ref, alpha_ref[1])

    # ---- stage 3: 3x3 conv + residual + PReLU (reuse cv2; border stays 0) --
    cv2[pl.ds(1, H), :] = h2
    y = conv_stage(cv2, b3_ref, bias3_ref, alpha_ref[2], residual=x1)

    o_ref[0] = y                                         # (H, W*Cout), lane-dense


# ----------------------------------------------------------------------------
# Wrapper glue: band-matrix weight packing + lane-dense layout plumbing.
# ----------------------------------------------------------------------------
def _band_weights(w_oihw, W, pad):
    """Pack OIHW conv weights into per-row-tap band matrices for the (H, W*C)
    layout:  B[kh, q*Cin + ci, w*Cout + co] = w[co, ci, kh, q - w + pad]
    (zero where q - w + pad falls outside [0, KW) -> 'same' padding in w)."""
    Cout, Cin, KH, KW = w_oihw.shape
    k = jnp.arange(KW)[:, None, None]
    q = jnp.arange(W)[None, :, None]
    wi = jnp.arange(W)[None, None, :]
    sel = (q == wi + k - pad).astype(jnp.float32)                  # (KW, W, W)
    B = jnp.einsum('oihk,kqw->hqiwo', w_oihw.astype(jnp.float32), sel)
    return B.reshape(KH, W * Cin, W * Cout)


def batchnorm_block_forward(x_nchw, params):
    N, Cin, H, W = x_nchw.shape
    Cout = params["conv1_w"].shape[0]
    WCo = W * Cout

    B1 = _band_weights(params["conv1_w"], W, pad=2)    # (5, W*Cin,  W*Cout)
    B2 = _band_weights(params["conv2_w"], W, pad=1)    # (3, W*Cout, W*Cout)
    B3 = _band_weights(params["conv3_w"], W, pad=1)
    bias1 = jnp.tile(params["conv1_b"].astype(jnp.float32), W)[None, :]
    bias2 = jnp.tile(params["conv2_b"].astype(jnp.float32), W)[None, :]
    bias3 = jnp.tile(params["conv3_b"].astype(jnp.float32), W)[None, :]
    alphas = jnp.stack([params["a1"], params["a2"],
                        params["a3"]]).astype(jnp.float32)          # (3,) SMEM

    # lane-dense activation slab: NCHW -> (N, H, W*Cin), lane index = w*Cin+ci
    x_rows = jnp.transpose(x_nchw, (0, 2, 3, 1)).reshape(N, H, W * Cin)
    x_rows = x_rows.astype(jnp.float32)

    kernel = functools.partial(_fused_block_kernel, H=H, W=W, Cin=Cin, Cout=Cout)

    out_rows = pl.pallas_call(
        kernel,
        out_shape=jax.ShapeDtypeStruct((N, H, WCo), jnp.float32),
        grid=(N,),
        in_specs=[
            pl.BlockSpec((1, H, W * Cin), lambda n: (n, 0, 0)),
            pl.BlockSpec(B1.shape, lambda n: (0, 0, 0)),
            pl.BlockSpec(B2.shape, lambda n: (0, 0, 0)),
            pl.BlockSpec(B3.shape, lambda n: (0, 0, 0)),
            pl.BlockSpec((1, WCo), lambda n: (0, 0)),
            pl.BlockSpec((1, WCo), lambda n: (0, 0)),
            pl.BlockSpec((1, WCo), lambda n: (0, 0)),
            pl.BlockSpec(memory_space=pltpu.MemorySpace.SMEM),   # alphas (3,)
        ],
        out_specs=pl.BlockSpec((1, H, WCo), lambda n: (n, 0, 0)),
        scratch_shapes=[
            pltpu.VMEM((H + 4, W * Cin), jnp.float32),   # 5x5 pad-h canvas
            pltpu.VMEM((H + 2, WCo), jnp.float32),       # 3x3 pad-h canvas
        ],
        compiler_params=pltpu.CompilerParams(dimension_semantics=("parallel",)),
    )(x_rows, B1, B2, B3, bias1, bias2, bias3, alphas)

    # (N, H, W*Cout) -> NCHW to match the PyTorch module
    return out_rows.reshape(N, H, W, Cout).transpose(0, 3, 1, 2)


# ----------------------------------------------------------------------------
# Pure-JAX reference (correctness check only)
# ----------------------------------------------------------------------------
def _conv_prelu_ref(x, w, b, alpha, residual=None):
    y = jax.lax.conv_general_dilated(
        x, w, window_strides=(1, 1), padding="SAME",
        dimension_numbers=("NCHW", "OIHW", "NCHW"),
        precision=jax.lax.Precision.HIGHEST)
    y = y + b[None, :, None, None]
    if residual is not None:
        y = y + residual
    return jnp.where(y > 0, y, alpha * y)


def batchnorm_block_reference(x, p):
    x1 = _conv_prelu_ref(x, p["conv1_w"], p["conv1_b"], p["a1"])
    h = _conv_prelu_ref(x1, p["conv2_w"], p["conv2_b"], p["a2"])
    return _conv_prelu_ref(h, p["conv3_w"], p["conv3_b"], p["a3"], residual=x1)


# ----------------------------------------------------------------------------
# Deterministic parameter init (PyTorch-style uniform(-1/sqrt(fan_in), ...))
# ----------------------------------------------------------------------------
def init_params(key, in_depth, out_depth):
    ks = jax.random.split(key, 6)

    def conv_init(kw_key, kb_key, cin, cout, ksz):
        fan_in = cin * ksz * ksz
        bound = 1.0 / jnp.sqrt(fan_in)
        w = jax.random.uniform(kw_key, (cout, cin, ksz, ksz), jnp.float32,
                               -bound, bound)
        b = jax.random.uniform(kb_key, (cout,), jnp.float32, -bound, bound)
        return w, b

    w1, b1 = conv_init(ks[0], ks[1], in_depth, out_depth, 5)
    w2, b2 = conv_init(ks[2], ks[3], out_depth, out_depth, 3)
    w3, b3 = conv_init(ks[4], ks[5], out_depth, out_depth, 3)
    return {
        "conv1_w": w1, "conv1_b": b1, "a1": jnp.float32(0.25),
        "conv2_w": w2, "conv2_b": b2, "a2": jnp.float32(0.25),
        "conv3_w": w3, "conv3_b": b3, "a3": jnp.float32(0.25),
        # bn1 (nn.BatchNorm2d(10)) exists in __init__ but is unused in forward.
    }


if __name__ == "__main__":
    N, Cin, Cout, H, W = 2, 4, 8, 16, 16
    key = jax.random.PRNGKey(0)
    kx, kp = jax.random.split(key)
    x = jax.random.normal(kx, (N, Cin, H, W), jnp.float32)
    params = init_params(kp, Cin, Cout)

    fwd = jax.jit(batchnorm_block_forward)
    out = jax.block_until_ready(fwd(x, params))
    ref = batchnorm_block_reference(x, params)

    assert out.shape == (N, Cout, H, W), out.shape
    # Tolerance covers the MXU multi-pass f32 matmul path vs. HIGHEST reference;
    # a real indexing/padding bug produces O(0.1..1) errors, far above this.
    err = float(jnp.max(jnp.abs(out - ref)))
    assert jnp.allclose(out, ref, atol=2e-2, rtol=2e-2), err
    print("KERNEL_OK")
</pallas_src>

<mosaic_0001>
module attributes {stable_mosaic.version = 11 : i64} {
  func.func @_fused_block_kernel(%arg0: i32, %arg1: memref<1x16x64xf32, #tpu.memory_space<vmem>>, %arg2: memref<5x64x128xf32, #tpu.memory_space<vmem>>, %arg3: memref<3x128x128xf32, #tpu.memory_space<vmem>>, %arg4: memref<3x128x128xf32, #tpu.memory_space<vmem>>, %arg5: memref<1x128xf32, #tpu.memory_space<vmem>>, %arg6: memref<1x128xf32, #tpu.memory_space<vmem>>, %arg7: memref<1x128xf32, #tpu.memory_space<vmem>>, %arg8: memref<3xf32, #tpu.memory_space<smem>>, %arg9: memref<1x16x128xf32, #tpu.memory_space<vmem>>, %arg10: memref<20x64xf32, #tpu.memory_space<vmem>>, %arg11: memref<18x128xf32, #tpu.memory_space<vmem>>) attributes {dimension_semantics = [#tpu.dimension_semantics<parallel>], iteration_bounds = array<i64: 2>, scalar_prefetch = 0 : i64, scratch_operands = 2 : i64, tpu.core_type = #tpu.core_type<tc>, window_params = [{transform_indices = @transform_0, window_bounds = array<i64: 1, 16, 64>}, {pipeline_mode = #tpu.pipeline_mode<synchronous>, transform_indices = @transform_1, window_bounds = array<i64: 5, 64, 128>}, {pipeline_mode = #tpu.pipeline_mode<synchronous>, transform_indices = @transform_2, window_bounds = array<i64: 3, 128, 128>}, {pipeline_mode = #tpu.pipeline_mode<synchronous>, transform_indices = @transform_3, window_bounds = array<i64: 3, 128, 128>}, {pipeline_mode = #tpu.pipeline_mode<synchronous>, transform_indices = @transform_4, window_bounds = array<i64: 1, 128>}, {pipeline_mode = #tpu.pipeline_mode<synchronous>, transform_indices = @transform_5, window_bounds = array<i64: 1, 128>}, {pipeline_mode = #tpu.pipeline_mode<synchronous>, transform_indices = @transform_6, window_bounds = array<i64: 1, 128>}, {transform_indices = @transform_7, window_bounds = array<i64: 3>}, {transform_indices = @transform_8, window_bounds = array<i64: 1, 16, 128>}]} {
    %cst = arith.constant 0.000000e+00 : f32
    %0 = vector.broadcast %cst : f32 to vector<20x64xf32>
    %c0 = arith.constant 0 : index
    %c0_0 = arith.constant 0 : index
    %1 = vector.load %arg10[%c0, %c0_0] : memref<20x64xf32, #tpu.memory_space<vmem>>, vector<20x64xf32>
    tpu.vector_store %arg10[%c0, %c0_0], %0 {strides = array<i32>} : memref<20x64xf32, #tpu.memory_space<vmem>>, vector<20x64xf32>,
    %c0_1 = arith.constant 0 : index
    %c0_2 = arith.constant 0 : index
    %c0_3 = arith.constant 0 : index
    %2 = vector.load %arg1[%c0_1, %c0_2, %c0_3] : memref<1x16x64xf32, #tpu.memory_space<vmem>>, vector<1x16x64xf32>
    %3 = vector.shape_cast %2 : vector<1x16x64xf32> to vector<16x64xf32>
    %c2 = arith.constant 2 : index
    %c0_4 = arith.constant 0 : index
    %4 = vector.load %arg10[%c2, %c0_4] : memref<20x64xf32, #tpu.memory_space<vmem>>, vector<16x64xf32>
    tpu.vector_store %arg10[%c2, %c0_4], %3 {strides = array<i32>} : memref<20x64xf32, #tpu.memory_space<vmem>>, vector<16x64xf32>,
    %c0_5 = arith.constant 0 : index
    %5 = memref.load %arg8[%c0_5] : memref<3xf32, #tpu.memory_space<smem>>
    %cst_6 = arith.constant 0.000000e+00 : f32
    %6 = vector.broadcast %cst_6 : f32 to vector<16x128xf32>
    %c0_7 = arith.constant 0 : index
    %c0_8 = arith.constant 0 : index
    %7 = vector.load %arg5[%c0_7, %c0_8] : memref<1x128xf32, #tpu.memory_space<vmem>>, vector<1x128xf32>
    %8 = vector.broadcast %7 : vector<1x128xf32> to vector<16x128xf32>
    %9 = arith.addf %6, %8 : vector<16x128xf32>
    %c0_9 = arith.constant 0 : index
    %c0_10 = arith.constant 0 : index
    %10 = vector.load %arg10[%c0_9, %c0_10] : memref<20x64xf32, #tpu.memory_space<vmem>>, vector<16x64xf32>
    %c0_11 = arith.constant 0 : index
    %c0_12 = arith.constant 0 : index
    %c0_13 = arith.constant 0 : index
    %11 = vector.load %arg2[%c0_11, %c0_12, %c0_13] : memref<5x64x128xf32, #tpu.memory_space<vmem>>, vector<1x64x128xf32>
    %12 = vector.shape_cast %11 : vector<1x64x128xf32> to vector<64x128xf32>
    %cst_14 = arith.constant dense<0.000000e+00> : vector<16x128xf32>
    %13 = tpu.matmul %10, %12, %cst_14 {dimension_numbers = #tpu.dot_dimension_numbers<[1], [0], [0], [1], [0, 0, 1, 1], [], []>} : vector<16x64xf32>, vector<64x128xf32>, vector<16x128xf32> -> vector<16x128xf32>
    %14 = arith.addf %9, %13 : vector<16x128xf32>
    %c1 = arith.constant 1 : index
    %c0_15 = arith.constant 0 : index
    %15 = vector.load %arg10[%c1, %c0_15] : memref<20x64xf32, #tpu.memory_space<vmem>>, vector<16x64xf32>
    %c1_16 = arith.constant 1 : index
    %c0_17 = arith.constant 0 : index
    %c0_18 = arith.constant 0 : index
    %16 = vector.load %arg2[%c1_16, %c0_17, %c0_18] : memref<5x64x128xf32, #tpu.memory_space<vmem>>, vector<1x64x128xf32>
    %17 = vector.shape_cast %16 : vector<1x64x128xf32> to vector<64x128xf32>
    %cst_19 = arith.constant dense<0.000000e+00> : vector<16x128xf32>
    %18 = tpu.matmul %15, %17, %cst_19 {dimension_numbers = #tpu.dot_dimension_numbers<[1], [0], [0], [1], [0, 0, 1, 1], [], []>} : vector<16x64xf32>, vector<64x128xf32>, vector<16x128xf32> -> vector<16x128xf32>
    %19 = arith.addf %14, %18 : vector<16x128xf32>
    %c2_20 = arith.constant 2 : index
    %c0_21 = arith.constant 0 : index
    %20 = vector.load %arg10[%c2_20, %c0_21] : memref<20x64xf32, #tpu.memory_space<vmem>>, vector<16x64xf32>
    %c2_22 = arith.constant 2 : index
    %c0_23 = arith.constant 0 : index
    %c0_24 = arith.constant 0 : index
    %21 = vector.load %arg2[%c2_22, %c0_23, %c0_24] : memref<5x64x128xf32, #tpu.memory_space<vmem>>, vector<1x64x128xf32>
    %22 = vector.shape_cast %21 : vector<1x64x128xf32> to vector<64x128xf32>
    %cst_25 = arith.constant dense<0.000000e+00> : vector<16x128xf32>
    %23 = tpu.matmul %20, %22, %cst_25 {dimension_numbers = #tpu.dot_dimension_numbers<[1], [0], [0], [1], [0, 0, 1, 1], [], []>} : vector<16x64xf32>, vector<64x128xf32>, vector<16x128xf32> -> vector<16x128xf32>
    %24 = arith.addf %19, %23 : vector<16x128xf32>
    %c3 = arith.constant 3 : index
    %c0_26 = arith.constant 0 : index
    %25 = vector.load %arg10[%c3, %c0_26] : memref<20x64xf32, #tpu.memory_space<vmem>>, vector<16x64xf32>
    %c3_27 = arith.constant 3 : index
    %c0_28 = arith.constant 0 : index
    %c0_29 = arith.constant 0 : index
    %26 = vector.load %arg2[%c3_27, %c0_28, %c0_29] : memref<5x64x128xf32, #tpu.memory_space<vmem>>, vector<1x64x128xf32>
    %27 = vector.shape_cast %26 : vector<1x64x128xf32> to vector<64x128xf32>
    %cst_30 = arith.constant dense<0.000000e+00> : vector<16x128xf32>
    %28 = tpu.matmul %25, %27, %cst_30 {dimension_numbers = #tpu.dot_dimension_numbers<[1], [0], [0], [1], [0, 0, 1, 1], [], []>} : vector<16x64xf32>, vector<64x128xf32>, vector<16x128xf32> -> vector<16x128xf32>
    %29 = arith.addf %24, %28 : vector<16x128xf32>
    %c4 = arith.constant 4 : index
    %c0_31 = arith.constant 0 : index
    %30 = vector.load %arg10[%c4, %c0_31] : memref<20x64xf32, #tpu.memory_space<vmem>>, vector<16x64xf32>
    %c4_32 = arith.constant 4 : index
    %c0_33 = arith.constant 0 : index
    %c0_34 = arith.constant 0 : index
    %31 = vector.load %arg2[%c4_32, %c0_33, %c0_34] : memref<5x64x128xf32, #tpu.memory_space<vmem>>, vector<1x64x128xf32>
    %32 = vector.shape_cast %31 : vector<1x64x128xf32> to vector<64x128xf32>
    %cst_35 = arith.constant dense<0.000000e+00> : vector<16x128xf32>
    %33 = tpu.matmul %30, %32, %cst_35 {dimension_numbers = #tpu.dot_dimension_numbers<[1], [0], [0], [1], [0, 0, 1, 1], [], []>} : vector<16x64xf32>, vector<64x128xf32>, vector<16x128xf32> -> vector<16x128xf32>
    %34 = arith.addf %29, %33 : vector<16x128xf32>
    %cst_36 = arith.constant 0.000000e+00 : f32
    %35 = vector.broadcast %cst_36 : f32 to vector<16x128xf32>
    %36 = arith.cmpf ogt, %34, %35 : vector<16x128xf32>
    %37 = vector.broadcast %5 : f32 to vector<16x128xf32>
    %38 = arith.mulf %37, %34 : vector<16x128xf32>
    %39 = arith.select %36, %34, %38 : vector<16x128xi1>, vector<16x128xf32>
    %cst_37 = arith.constant 0.000000e+00 : f32
    %40 = vector.broadcast %cst_37 : f32 to vector<18x128xf32>
    %c0_38 = arith.constant 0 : index
    %c0_39 = arith.constant 0 : index
    %41 = vector.load %arg11[%c0_38, %c0_39] : memref<18x128xf32, #tpu.memory_space<vmem>>, vector<18x128xf32>
    tpu.vector_store %arg11[%c0_38, %c0_39], %40 {strides = array<i32>} : memref<18x128xf32, #tpu.memory_space<vmem>>, vector<18x128xf32>,
    %c1_40 = arith.constant 1 : index
    %c0_41 = arith.constant 0 : index
    %42 = vector.load %arg11[%c1_40, %c0_41] : memref<18x128xf32, #tpu.memory_space<vmem>>, vector<16x128xf32>
    tpu.vector_store %arg11[%c1_40, %c0_41], %39 {strides = array<i32>} : memref<18x128xf32, #tpu.memory_space<vmem>>, vector<16x128xf32>,
    %c1_42 = arith.constant 1 : index
    %43 = memref.load %arg8[%c1_42] : memref<3xf32, #tpu.memory_space<smem>>
    %cst_43 = arith.constant 0.000000e+00 : f32
    %44 = vector.broadcast %cst_43 : f32 to vector<16x128xf32>
    %c0_44 = arith.constant 0 : index
    %c0_45 = arith.constant 0 : index
    %45 = vector.load %arg6[%c0_44, %c0_45] : memref<1x128xf32, #tpu.memory_space<vmem>>, vector<1x128xf32>
    %46 = vector.broadcast %45 : vector<1x128xf32> to vector<16x128xf32>
    %47 = arith.addf %44, %46 : vector<16x128xf32>
    %c0_46 = arith.constant 0 : index
    %c0_47 = arith.constant 0 : index
    %48 = vector.load %arg11[%c0_46, %c0_47] : memref<18x128xf32, #tpu.memory_space<vmem>>, vector<16x128xf32>
    %c0_48 = arith.constant 0 : index
    %c0_49 = arith.constant 0 : index
    %c0_50 = arith.constant 0 : index
    %49 = vector.load %arg3[%c0_48, %c0_49, %c0_50] : memref<3x128x128xf32, #tpu.memory_space<vmem>>, vector<1x128x128xf32>
    %50 = vector.shape_cast %49 : vector<1x128x128xf32> to vector<128x128xf32>
    %cst_51 = arith.constant dense<0.000000e+00> : vector<16x128xf32>
    %51 = tpu.matmul %48, %50, %cst_51 {dimension_numbers = #tpu.dot_dimension_numbers<[1], [0], [0], [1], [0, 0, 1, 1], [], []>} : vector<16x128xf32>, vector<128x128xf32>, vector<16x128xf32> -> vector<16x128xf32>
    %52 = arith.addf %47, %51 : vector<16x128xf32>
    %c1_52 = arith.constant 1 : index
    %c0_53 = arith.constant 0 : index
    %53 = vector.load %arg11[%c1_52, %c0_53] : memref<18x128xf32, #tpu.memory_space<vmem>>, vector<16x128xf32>
    %c1_54 = arith.constant 1 : index
    %c0_55 = arith.constant 0 : index
    %c0_56 = arith.constant 0 : index
    %54 = vector.load %arg3[%c1_54, %c0_55, %c0_56] : memref<3x128x128xf32, #tpu.memory_space<vmem>>, vector<1x128x128xf32>
    %55 = vector.shape_cast %54 : vector<1x128x128xf32> to vector<128x128xf32>
    %cst_57 = arith.constant dense<0.000000e+00> : vector<16x128xf32>
    %56 = tpu.matmul %53, %55, %cst_57 {dimension_numbers = #tpu.dot_dimension_numbers<[1], [0], [0], [1], [0, 0, 1, 1], [], []>} : vector<16x128xf32>, vector<128x128xf32>, vector<16x128xf32> -> vector<16x128xf32>
    %57 = arith.addf %52, %56 : vector<16x128xf32>
    %c2_58 = arith.constant 2 : index
    %c0_59 = arith.constant 0 : index
    %58 = vector.load %arg11[%c2_58, %c0_59] : memref<18x128xf32, #tpu.memory_space<vmem>>, vector<16x128xf32>
    %c2_60 = arith.constant 2 : index
    %c0_61 = arith.constant 0 : index
    %c0_62 = arith.constant 0 : index
    %59 = vector.load %arg3[%c2_60, %c0_61, %c0_62] : memref<3x128x128xf32, #tpu.memory_space<vmem>>, vector<1x128x128xf32>
    %60 = vector.shape_cast %59 : vector<1x128x128xf32> to vector<128x128xf32>
    %cst_63 = arith.constant dense<0.000000e+00> : vector<16x128xf32>
    %61 = tpu.matmul %58, %60, %cst_63 {dimension_numbers = #tpu.dot_dimension_numbers<[1], [0], [0], [1], [0, 0, 1, 1], [], []>} : vector<16x128xf32>, vector<128x128xf32>, vector<16x128xf32> -> vector<16x128xf32>
    %62 = arith.addf %57, %61 : vector<16x128xf32>
    %cst_64 = arith.constant 0.000000e+00 : f32
    %63 = vector.broadcast %cst_64 : f32 to vector<16x128xf32>
    %64 = arith.cmpf ogt, %62, %63 : vector<16x128xf32>
    %65 = vector.broadcast %43 : f32 to vector<16x128xf32>
    %66 = arith.mulf %65, %62 : vector<16x128xf32>
    %67 = arith.select %64, %62, %66 : vector<16x128xi1>, vector<16x128xf32>
    %c1_65 = arith.constant 1 : index
    %c0_66 = arith.constant 0 : index
    %68 = vector.load %arg11[%c1_65, %c0_66] : memref<18x128xf32, #tpu.memory_space<vmem>>, vector<16x128xf32>
    tpu.vector_store %arg11[%c1_65, %c0_66], %67 {strides = array<i32>} : memref<18x128xf32, #tpu.memory_space<vmem>>, vector<16x128xf32>,
    %c2_67 = arith.constant 2 : index
    %69 = memref.load %arg8[%c2_67] : memref<3xf32, #tpu.memory_space<smem>>
    %cst_68 = arith.constant 0.000000e+00 : f32
    %70 = vector.broadcast %cst_68 : f32 to vector<16x128xf32>
    %c0_69 = arith.constant 0 : index
    %c0_70 = arith.constant 0 : index
    %71 = vector.load %arg7[%c0_69, %c0_70] : memref<1x128xf32, #tpu.memory_space<vmem>>, vector<1x128xf32>
    %72 = vector.broadcast %71 : vector<1x128xf32> to vector<16x128xf32>
    %73 = arith.addf %70, %72 : vector<16x128xf32>
    %c0_71 = arith.constant 0 : index
    %c0_72 = arith.constant 0 : index
    %74 = vector.load %arg11[%c0_71, %c0_72] : memref<18x128xf32, #tpu.memory_space<vmem>>, vector<16x128xf32>
    %c0_73 = arith.constant 0 : index
    %c0_74 = arith.constant 0 : index
    %c0_75 = arith.constant 0 : index
    %75 = vector.load %arg4[%c0_73, %c0_74, %c0_75] : memref<3x128x128xf32, #tpu.memory_space<vmem>>, vector<1x128x128xf32>
    %76 = vector.shape_cast %75 : vector<1x128x128xf32> to vector<128x128xf32>
    %cst_76 = arith.constant dense<0.000000e+00> : vector<16x128xf32>
    %77 = tpu.matmul %74, %76, %cst_76 {dimension_numbers = #tpu.dot_dimension_numbers<[1], [0], [0], [1], [0, 0, 1, 1], [], []>} : vector<16x128xf32>, vector<128x128xf32>, vector<16x128xf32> -> vector<16x128xf32>
    %78 = arith.addf %73, %77 : vector<16x128xf32>
    %c1_77 = arith.constant 1 : index
    %c0_78 = arith.constant 0 : index
    %79 = vector.load %arg11[%c1_77, %c0_78] : memref<18x128xf32, #tpu.memory_space<vmem>>, vector<16x128xf32>
    %c1_79 = arith.constant 1 : index
    %c0_80 = arith.constant 0 : index
    %c0_81 = arith.constant 0 : index
    %80 = vector.load %arg4[%c1_79, %c0_80, %c0_81] : memref<3x128x128xf32, #tpu.memory_space<vmem>>, vector<1x128x128xf32>
    %81 = vector.shape_cast %80 : vector<1x128x128xf32> to vector<128x128xf32>
    %cst_82 = arith.constant dense<0.000000e+00> : vector<16x128xf32>
    %82 = tpu.matmul %79, %81, %cst_82 {dimension_numbers = #tpu.dot_dimension_numbers<[1], [0], [0], [1], [0, 0, 1, 1], [], []>} : vector<16x128xf32>, vector<128x128xf32>, vector<16x128xf32> -> vector<16x128xf32>
    %83 = arith.addf %78, %82 : vector<16x128xf32>
    %c2_83 = arith.constant 2 : index
    %c0_84 = arith.constant 0 : index
    %84 = vector.load %arg11[%c2_83, %c0_84] : memref<18x128xf32, #tpu.memory_space<vmem>>, vector<16x128xf32>
    %c2_85 = arith.constant 2 : index
    %c0_86 = arith.constant 0 : index
    %c0_87 = arith.constant 0 : index
    %85 = vector.load %arg4[%c2_85, %c0_86, %c0_87] : memref<3x128x128xf32, #tpu.memory_space<vmem>>, vector<1x128x128xf32>
    %86 = vector.shape_cast %85 : vector<1x128x128xf32> to vector<128x128xf32>
    %cst_88 = arith.constant dense<0.000000e+00> : vector<16x128xf32>
    %87 = tpu.matmul %84, %86, %cst_88 {dimension_numbers = #tpu.dot_dimension_numbers<[1], [0], [0], [1], [0, 0, 1, 1], [], []>} : vector<16x128xf32>, vector<128x128xf32>, vector<16x128xf32> -> vector<16x128xf32>
    %88 = arith.addf %83, %87 : vector<16x128xf32>
    %89 = arith.addf %88, %39 : vector<16x128xf32>
    %cst_89 = arith.constant 0.000000e+00 : f32
    %90 = vector.broadcast %cst_89 : f32 to vector<16x128xf32>
    %91 = arith.cmpf ogt, %89, %90 : vector<16x128xf32>
    %92 = vector.broadcast %69 : f32 to vector<16x128xf32>
    %93 = arith.mulf %92, %89 : vector<16x128xf32>
    %94 = arith.select %91, %89, %93 : vector<16x128xi1>, vector<16x128xf32>
    %c0_90 = arith.constant 0 : index
    %c0_91 = arith.constant 0 : index
    %c0_92 = arith.constant 0 : index
    %95 = vector.load %arg9[%c0_90, %c0_91, %c0_92] : memref<1x16x128xf32, #tpu.memory_space<vmem>>, vector<1x16x128xf32>
    %96 = vector.shape_cast %95 : vector<1x16x128xf32> to vector<16x128xf32>
    %97 = vector.shape_cast %94 : vector<16x128xf32> to vector<1x16x128xf32>
    tpu.vector_store %arg9[%c0_90, %c0_91, %c0_92], %97 {strides = array<i32>} : memref<1x16x128xf32, #tpu.memory_space<vmem>>, vector<1x16x128xf32>,
    return
  }
  func.func @transform_0(%arg0: i32) -> (i32, i32, i32) {
    %c0_i32 = arith.constant 0 : i32
    %c0_i32_0 = arith.constant 0 : i32
    %c0_i32_1 = arith.constant 0 : i32
    return %arg0, %c0_i32, %c0_i32_0 : i32, i32, i32
  }
  func.func @transform_1(%arg0: i32) -> (i32, i32, i32) {
    %c0_i32 = arith.constant 0 : i32
    %c0_i32_0 = arith.constant 0 : i32
    %c0_i32_1 = arith.constant 0 : i32
    %c0_i32_2 = arith.constant 0 : i32
    return %c0_i32, %c0_i32_0, %c0_i32_1 : i32, i32, i32
  }
  func.func @transform_2(%arg0: i32) -> (i32, i32, i32) {
    %c0_i32 = arith.constant 0 : i32
    %c0_i32_0 = arith.constant 0 : i32
    %c0_i32_1 = arith.constant 0 : i32
    %c0_i32_2 = arith.constant 0 : i32
    return %c0_i32, %c0_i32_0, %c0_i32_1 : i32, i32, i32
  }
  func.func @transform_3(%arg0: i32) -> (i32, i32, i32) {
    %c0_i32 = arith.constant 0 : i32
    %c0_i32_0 = arith.constant 0 : i32
    %c0_i32_1 = arith.constant 0 : i32
    %c0_i32_2 = arith.constant 0 : i32
    return %c0_i32, %c0_i32_0, %c0_i32_1 : i32, i32, i32
  }
  func.func @transform_4(%arg0: i32) -> (i32, i32) {
    %c0_i32 = arith.constant 0 : i32
    %c0_i32_0 = arith.constant 0 : i32
    %c0_i32_1 = arith.constant 0 : i32
    return %c0_i32, %c0_i32_0 : i32, i32
  }
  func.func @transform_5(%arg0: i32) -> (i32, i32) {
    %c0_i32 = arith.constant 0 : i32
    %c0_i32_0 = arith.constant 0 : i32
    %c0_i32_1 = arith.constant 0 : i32
    return %c0_i32, %c0_i32_0 : i32, i32
  }
  func.func @transform_6(%arg0: i32) -> (i32, i32) {
    %c0_i32 = arith.constant 0 : i32
    %c0_i32_0 = arith.constant 0 : i32
    %c0_i32_1 = arith.constant 0 : i32
    return %c0_i32, %c0_i32_0 : i32, i32
  }
  func.func @transform_7(%arg0: i32) -> i32 {
    %c0_i32 = arith.constant 0 : i32
    %c0_i32_0 = arith.constant 0 : i32
    return %c0_i32 : i32
  }
  func.func @transform_8(%arg0: i32) -> (i32, i32, i32) {
    %c0_i32 = arith.constant 0 : i32
    %c0_i32_0 = arith.constant 0 : i32
    %c0_i32_1 = arith.constant 0 : i32
    return %arg0, %c0_i32, %c0_i32_0 : i32, i32, i32
  }
}

</mosaic_0001>

<llo_original>
// kernel: tile.18
$region0: #{tile.18}
  #allocation0 [shape = 's32[1]{0}', space=sflag, size = 0x4, scoped, tag = 'scoped memory for tile.18']
  %s0 = inlined_call_operand.vmem [shape: f32[8], index: 0, kind: input, shape index: {}]
  %s1 = inlined_call_operand.vmem [shape: f32[16,8], index: 1, kind: output, shape index: {}]
  // Predicated region
  $region2: #{tile.18} parent=0 // pred_check
    _
  $region3: #{tile.18} parent=0 // pred_check_branch
    %3 = sbr.rel (0) target = $region5
  $region4: #{tile.18} parent=0 // pred_region
    _
  $region5: #{tile.18} parent=0 // pred_fallthru
    _
  %v4 = vld [vmem:[%s0] ss:$0 sm:$0xff]
  %5 = vst [vmem:[%s1] sm:$0xff] %v4
  %s6 = scalar_lea.vmem %s1, 8
  %7 = vst [vmem:[%s6] sm:$0xff] %v4

// kernel: tile.19
$region0: #{tile.19}
  %s0 = inlined_call_operand.vmem [shape: f32[16,8], index: 0, kind: input, shape index: {}]
  %s1 = inlined_call_operand.vmem [shape: f32[1,128], index: 1, kind: output, shape index: {}]
  $region1: #{tile.19} parent=0
    #allocation0 [shape = 'u8[4096]{0}', space=vmem, size = 0x1000, scoped, tag = 'scoped mem for output reshape']
    %v2 = vld [vmem:[%s0] sm:$0x1]
    %vm3 = vcmask 64512
    %4 = vst.msk [vmem:[#allocation0] sm:$0x1] %vm3, %v2
    %s5 = scalar_lea.vmem %s0, 15
    %v6 = vld [vmem:[%s5] sm:$0x1]
    %7 = vrot.lane.b32.xlu0 %v6, 120
    %v8 = vpop.permute.xlu0 %7
    %vm9 = vcmask 1048512
    %10 = vst.msk [vmem:[#allocation0] sm:$0x1] %vm9, %v8
    %s11 = scalar_lea.vmem %s0, 14
    %v12 = vld [vmem:[%s11] sm:$0x1]
    %13 = vrot.lane.b32.xlu0 %v12, 112
    %v14 = vpop.permute.xlu0 %13
    %vm15 = vcmask 982912
    %16 = vst.msk [vmem:[#allocation0] sm:$0x1] %vm15, %v14
    %s17 = scalar_lea.vmem %s0, 13
    %v18 = vld [vmem:[%s17] sm:$0x1]
    %19 = vrot.lane.b32.xlu0 %v18, 104
    %v20 = vpop.permute.xlu0 %19
    %vm21 = vcmask 917312
    %22 = vst.msk [vmem:[#allocation0] sm:$0x1] %vm21, %v20
    %s23 = scalar_lea.vmem %s0, 12
    %v24 = vld [vmem:[%s23] sm:$0x1]
    %25 = vrot.lane.b32.xlu0 %v24, 96
    %v26 = vpop.permute.xlu0 %25
    %vm27 = vcmask 851712
    %28 = vst.msk [vmem:[#allocation0] sm:$0x1] %vm27, %v26
    %s29 = scalar_lea.vmem %s0, 11
    %v30 = vld [vmem:[%s29] sm:$0x1]
    %31 = vrot.lane.b32.xlu0 %v30, 88
    %v32 = vpop.permute.xlu0 %31
    %vm33 = vcmask 786112
    %34 = vst.msk [vmem:[#allocation0] sm:$0x1] %vm33, %v32
    %s35 = scalar_lea.vmem %s0, 10
    %v36 = vld [vmem:[%s35] sm:$0x1]
    %37 = vrot.lane.b32.xlu0 %v36, 80
    %v38 = vpop.permute.xlu0 %37
    %vm39 = vcmask 720512
    %40 = vst.msk [vmem:[#allocation0] sm:$0x1] %vm39, %v38
    %s41 = scalar_lea.vmem %s0, 9
    %v42 = vld [vmem:[%s41] sm:$0x1]
    %43 = vrot.lane.b32.xlu0 %v42, 72
    %v44 = vpop.permute.xlu0 %43
    %vm45 = vcmask 654912
    %46 = vst.msk [vmem:[#allocation0] sm:$0x1] %vm45, %v44
    %s47 = scalar_lea.vmem %s0, 8
    %v48 = vld [vmem:[%s47] sm:$0x1]
    %49 = vrot.lane.b32.xlu0 %v48, 64
    %v50 = vpop.permute.xlu0 %49
    %vm51 = vcmask 589312
    %52 = vst.msk [vmem:[#allocation0] sm:$0x1] %vm51, %v50
    %s53 = scalar_lea.vmem %s0, 7
    %v54 = vld [vmem:[%s53] sm:$0x1]
    %55 = vrot.lane.b32.xlu0 %v54, 56
    %v56 = vpop.permute.xlu0 %55
    %vm57 = vcmask 523712
    %58 = vst.msk [vmem:[#allocation0] sm:$0x1] %vm57, %v56
    %s59 = scalar_lea.vmem %s0, 6
    %v60 = vld [vmem:[%s59] sm:$0x1]
    %61 = vrot.lane.b32.xlu0 %v60, 48
    %v62 = vpop.permute.xlu0 %61
    %vm63 = vcmask 458112
    %64 = vst.msk [vmem:[#allocation0] sm:$0x1] %vm63, %v62
    %s65 = scalar_lea.vmem %s0, 5
    %v66 = vld [vmem:[%s65] sm:$0x1]
    %67 = vrot.lane.b32.xlu0 %v66, 40
    %v68 = vpop.permute.xlu0 %67
    %vm69 = vcmask 392512
    %70 = vst.msk [vmem:[#allocation0] sm:$0x1] %vm69, %v68
    %s71 = scalar_lea.vmem %s0, 4
    %v72 = vld [vmem:[%s71] sm:$0x1]
    %73 = vrot.lane.b32.xlu0 %v72, 32
    %v74 = vpop.permute.xlu0 %73
    %vm75 = vcmask 326912
    %76 = vst.msk [vmem:[#allocation0] sm:$0x1] %vm75, %v74
    %s77 = scalar_lea.vmem %s0, 3
    %v78 = vld [vmem:[%s77] sm:$0x1]
    %79 = vrot.lane.b32.xlu0 %v78, 24
    %v80 = vpop.permute.xlu0 %79
    %vm81 = vcmask 261312
    %82 = vst.msk [vmem:[#allocation0] sm:$0x1] %vm81, %v80
    %s83 = scalar_lea.vmem %s0, 2
    %v84 = vld [vmem:[%s83] sm:$0x1]
    %85 = vrot.lane.b32.xlu0 %v84, 16
    %v86 = vpop.permute.xlu0 %85
    %vm87 = vcmask 195712
    %88 = vst.msk [vmem:[#allocation0] sm:$0x1] %vm87, %v86
    %s89 = scalar_lea.vmem %s0, 1
    %v90 = vld [vmem:[%s89] sm:$0x1]
    %91 = vrot.lane.b32.xlu0 %v90, 8
    %v92 = vpop.permute.xlu0 %91
    %vm93 = vcmask 130112
    %94 = vst.msk [vmem:[#allocation0] sm:$0x1] %vm93, %v92
    %s96 = sshll.u32 1, 1
    %s97 = ssub.s32 %s96, 1
    %v99 = vld [vmem:[#allocation0] sm:%s97]
    %s100 = sshll.u32 1, 1
    %s101 = ssub.s32 %s100, 1
    %102 = vst [vmem:[%s1] sm:%s101] %v99

// kernel: batchnorm_block_forward.1
$region0: #{batchnorm_block_forward.1}
  #allocation0 [shape = 'u32[]', space=smem, size = 0x4, offset = 0x4, fixed_abs, tag = 'smem constant byte address 0x4 - core index']
  #allocation1 [shape = 'u32[144,128]{1,0:T(1,128)}', space=vmem, size = 0x12000, scoped, tag = 'internal scratch']
  #allocation2 [shape = 'f32[20,64]{1,0:T(8,128)}', space=vmem, size = 0x3000, scoped, tag = 'scratch operand']
  #allocation3 [shape = 'f32[18,128]{1,0:T(8,128)}', space=vmem, size = 0x3000, scoped, tag = 'scratch operand']
  %s0 = inlined_call_operand.vmem [shape: f32[2,16,64], index: 0, kind: input, shape index: {}]
  %s1 = inlined_call_operand.vmem [shape: f32[5,64,128], index: 1, kind: input, shape index: {}]
  %s2 = inlined_call_operand.vmem [shape: f32[3,128,128], index: 2, kind: input, shape index: {}]
  %s3 = inlined_call_operand.vmem [shape: f32[3,128,128], index: 3, kind: input, shape index: {}]
  %s4 = inlined_call_operand.vmem [shape: f32[1,128], index: 4, kind: input, shape index: {}]
  %s5 = inlined_call_operand.vmem [shape: f32[1,128], index: 5, kind: input, shape index: {}]
  %s6 = inlined_call_operand.vmem [shape: f32[1,128], index: 6, kind: input, shape index: {}]
  %s7 = inlined_call_operand.vmem [shape: f32[3], index: 7, kind: input, shape index: {}]
  %s8 = inlined_call_operand.vmem [shape: f32[2,16,128], index: 8, kind: output, shape index: {}]
  %s9 = sld [smem:[#allocation0]]
  $region69: #{batchnorm_block_forward.1} parent=0
    _
  %s11 = ssub.s32 1, %s9
  %s12 = scalar_select 0, %s11, %s9
  $region1: #{batchnorm_block_forward.1} parent=0
    #allocation4 [shape = 'u8[512]{0}', space=smem, size = 0x200, scoped, tag = 'input window, operand 7, single buffered']
    #allocation5 [shape = 's32[2]{0}', space=sflag, size = 0x8, scoped, tag = 'scoped memory for batchnorm_block_forward.1']
    %13 = vsyncpa [#allocation5], 0
    loop: start=0, step=1, limit=4
    $region2: #{batchnorm_block_forward.1} parent=1 // loop_pre_header
      _
    $region3: #{batchnorm_block_forward.1} parent=1 // loop_header
      %s15 = sphi 0, %s19
      %p16 = scmp.ge.s32.totalorder %s15, 4
      %s25 = sphi 0, %s27
      %s28 = sphi 0, %s25
      %s29 = sphi 0, %s28
      %s45 = sphi 0, %s29
      %s49 = sphi 0, %s49
      %s51 = sphi 0, %s49
      %s52 = sphi 0, %s51
      %s66 = sphi 0, %s52
      %s70 = sphi 0, %s70
      %s72 = sphi 0, %s70
      %s73 = sphi 0, %s72
      %s87 = sphi 0, %s73
      %s91 = sphi 0, %s91
      %s93 = sphi 0, %s91
      %s94 = sphi 0, %s93
      %s108 = sphi 0, %s94
      %s112 = sphi 0, %s112
      %s114 = sphi 0, %s112
      %s115 = sphi 0, %s114
      %s129 = sphi 0, %s115
      %s133 = sphi 0, %s133
      %s135 = sphi 0, %s133
      %s136 = sphi 0, %s135
      %s150 = sphi 0, %s136
      %s154 = sphi 0, %s154
      %s156 = sphi 0, %s154
      %s157 = sphi 0, %s156
      %s171 = sphi 0, %s157
      %s175 = sphi 0, %s175
      %s177 = sphi 0, %s175
      %s178 = sphi 0, %s177
      %s192 = sphi 0, %s178
      %s198 = sphi 0, %s200
      %s201 = sphi 0, %s198
      %s202 = sphi 0, %s201
      %s218 = sphi 0, %s202
    $region4: #{batchnorm_block_forward.1} parent=1 // loop_header_branch
      %18 = sbr.rel (%p16) target = $region8
    $region5: #{batchnorm_block_forward.1} parent=1 // loop_body
      %s20 = ssub.s32 %s15, 1
      %s21 = ssub.s32 %s15, 2
      %s22 = sadd.s32 %s15, 1
      %s23 = ssub.s32 %s15, %s22
      %p24 = scmp.eq.s32.totalorder %s23, 0
      %s26 = sadd.s32 %s25, 1
      %s27 = scalar_select %p24, %s25, %s26
      %p30 = pneg %p24
      %p31 = scmp.eq.s32.totalorder %s15, 1
      %p32 = por %p30, %p31
      %p33 = scmp.ne.s32.totalorder %s25, %s28
      %p34 = scmp.eq.s32.totalorder %s15, 0
      %p35 = por %p33, %p34
      %p36 = scmp.ne.s32.totalorder %s25, %s28
      %p37 = scmp.eq.s32.totalorder %s20, 1
      %p38 = por %p36, %p37
      %p39 = scmp.ne.s32.totalorder %s28, %s29
      %p40 = scmp.eq.s32.totalorder %s20, 0
      %p41 = por %p39, %p40
      %p42 = scmp.ne.s32.totalorder %s28, %s29
      %p43 = scmp.eq.s32.totalorder %s21, 1
      %p44 = por %p42, %p43
      %p46 = scmp.ne.s32.totalorder %s29, %s45
      %p47 = scmp.eq.s32.totalorder %s21, 0
      %p48 = por %p46, %p47
      %s50 = sadd.s32 %s49, 1
      %p53 = scmp.eq.s32.totalorder %s15, 1
      %p54 = scmp.ne.s32.totalorder %s49, %s51
      %p55 = scmp.eq.s32.totalorder %s15, 0
      %p56 = por %p54, %p55
      %p57 = scmp.ne.s32.totalorder %s49, %s51
      %p58 = scmp.eq.s32.totalorder %s20, 1
      %p59 = por %p57, %p58
      %p60 = scmp.ne.s32.totalorder %s51, %s52
      %p61 = scmp.eq.s32.totalorder %s20, 0
      %p62 = por %p60, %p61
      %p63 = scmp.ne.s32.totalorder %s51, %s52
      %p64 = scmp.eq.s32.totalorder %s21, 1
      %p65 = por %p63, %p64
      %p67 = scmp.ne.s32.totalorder %s52, %s66
      %p68 = scmp.eq.s32.totalorder %s21, 0
      %p69 = por %p67, %p68
      %s71 = sadd.s32 %s70, 1
      %p74 = scmp.eq.s32.totalorder %s15, 1
      %p75 = scmp.ne.s32.totalorder %s70, %s72
      %p76 = scmp.eq.s32.totalorder %s15, 0
      %p77 = por %p75, %p76
      %p78 = scmp.ne.s32.totalorder %s70, %s72
      %p79 = scmp.eq.s32.totalorder %s20, 1
      %p80 = por %p78, %p79
      %p81 = scmp.ne.s32.totalorder %s72, %s73
      %p82 = scmp.eq.s32.totalorder %s20, 0
      %p83 = por %p81, %p82
      %p84 = scmp.ne.s32.totalorder %s72, %s73
      %p85 = scmp.eq.s32.totalorder %s21, 1
      %p86 = por %p84, %p85
      %p88 = scmp.ne.s32.totalorder %s73, %s87
      %p89 = scmp.eq.s32.totalorder %s21, 0
      %p90 = por %p88, %p89
      %s92 = sadd.s32 %s91, 1
      %p95 = scmp.eq.s32.totalorder %s15, 1
      %p96 = scmp.ne.s32.totalorder %s91, %s93
      %p97 = scmp.eq.s32.totalorder %s15, 0
      %p98 = por %p96, %p97
      %p99 = scmp.ne.s32.totalorder %s91, %s93
      %p100 = scmp.eq.s32.totalorder %s20, 1
      %p101 = por %p99, %p100
      %p102 = scmp.ne.s32.totalorder %s93, %s94
      %p103 = scmp.eq.s32.totalorder %s20, 0
      %p104 = por %p102, %p103
      %p105 = scmp.ne.s32.totalorder %s93, %s94
      %p106 = scmp.eq.s32.totalorder %s21, 1
      %p107 = por %p105, %p106
      %p109 = scmp.ne.s32.totalorder %s94, %s108
      %p110 = scmp.eq.s32.totalorder %s21, 0
      %p111 = por %p109, %p110
      %s113 = sadd.s32 %s112, 1
      %p116 = scmp.eq.s32.totalorder %s15, 1
      %p117 = scmp.ne.s32.totalorder %s112, %s114
      %p118 = scmp.eq.s32.totalorder %s15, 0
      %p119 = por %p117, %p118
      %p120 = scmp.ne.s32.totalorder %s112, %s114
      %p121 = scmp.eq.s32.totalorder %s20, 1
      %p122 = por %p120, %p121
      %p123 = scmp.ne.s32.totalorder %s114, %s115
      %p124 = scmp.eq.s32.totalorder %s20, 0
      %p125 = por %p123, %p124
      %p126 = scmp.ne.s32.totalorder %s114, %s115
      %p127 = scmp.eq.s32.totalorder %s21, 1
      %p128 = por %p126, %p127
      %p130 = scmp.ne.s32.totalorder %s115, %s129
      %p131 = scmp.eq.s32.totalorder %s21, 0
      %p132 = por %p130, %p131
      %s134 = sadd.s32 %s133, 1
      %p137 = scmp.eq.s32.totalorder %s15, 1
      %p138 = scmp.ne.s32.totalorder %s133, %s135
      %p139 = scmp.eq.s32.totalorder %s15, 0
      %p140 = por %p138, %p139
      %p141 = scmp.ne.s32.totalorder %s133, %s135
      %p142 = scmp.eq.s32.totalorder %s20, 1
      %p143 = por %p141, %p142
      %p144 = scmp.ne.s32.totalorder %s135, %s136
      %p145 = scmp.eq.s32.totalorder %s20, 0
      %p146 = por %p144, %p145
      %p147 = scmp.ne.s32.totalorder %s135, %s136
      %p148 = scmp.eq.s32.totalorder %s21, 1
      %p149 = por %p147, %p148
      %p151 = scmp.ne.s32.totalorder %s136, %s150
      %p152 = scmp.eq.s32.totalorder %s21, 0
      %p153 = por %p151, %p152
      %s155 = sadd.s32 %s154, 1
      %p158 = scmp.eq.s32.totalorder %s15, 1
      %p159 = scmp.ne.s32.totalorder %s154, %s156
      %p160 = scmp.eq.s32.totalorder %s15, 0
      %p161 = por %p159, %p160
      %p162 = scmp.ne.s32.totalorder %s154, %s156
      %p163 = scmp.eq.s32.totalorder %s20, 1
      %p164 = por %p162, %p163
      %p165 = scmp.ne.s32.totalorder %s156, %s157
      %p166 = scmp.eq.s32.totalorder %s20, 0
      %p167 = por %p165, %p166
      %p168 = scmp.ne.s32.totalorder %s156, %s157
      %p169 = scmp.eq.s32.totalorder %s21, 1
      %p170 = por %p168, %p169
      %p172 = scmp.ne.s32.totalorder %s157, %s171
      %p173 = scmp.eq.s32.totalorder %s21, 0
      %p174 = por %p172, %p173
      %s176 = sadd.s32 %s175, 1
      %p179 = scmp.eq.s32.totalorder %s15, 1
      %p180 = scmp.ne.s32.totalorder %s175, %s177
      %p181 = scmp.eq.s32.totalorder %s15, 0
      %p182 = por %p180, %p181
      %p183 = scmp.ne.s32.totalorder %s175, %s177
      %p184 = scmp.eq.s32.totalorder %s20, 1
      %p185 = por %p183, %p184
      %p186 = scmp.ne.s32.totalorder %s177, %s178
      %p187 = scmp.eq.s32.totalorder %s20, 0
      %p188 = por %p186, %p187
      %p189 = scmp.ne.s32.totalorder %s177, %s178
      %p190 = scmp.eq.s32.totalorder %s21, 1
      %p191 = por %p189, %p190
      %p193 = scmp.ne.s32.totalorder %s178, %s192
      %p194 = scmp.eq.s32.totalorder %s21, 0
      %p195 = por %p193, %p194
      %s196 = ssub.s32 %s15, %s22
      %p197 = scmp.eq.s32.totalorder %s196, 0
      %s199 = sadd.s32 %s198, 1
      %s200 = scalar_select %p197, %s198, %s199
      %p203 = pneg %p197
      %p204 = scmp.eq.s32.totalorder %s15, 1
      %p205 = por %p203, %p204
      %p206 = scmp.ne.s32.totalorder %s198, %s201
      %p207 = scmp.eq.s32.totalorder %s15, 0
      %p208 = por %p206, %p207
      %p209 = scmp.ne.s32.totalorder %s198, %s201
      %p210 = scmp.eq.s32.totalorder %s20, 1
      %p211 = por %p209, %p210
      %p212 = scmp.ne.s32.totalorder %s201, %s202
      %p213 = scmp.eq.s32.totalorder %s20, 0
      %p214 = por %p212, %p213
      %p215 = scmp.ne.s32.totalorder %s201, %s202
      %p216 = scmp.eq.s32.totalorder %s21, 1
      %p217 = por %p215, %p216
      %p219 = scmp.ne.s32.totalorder %s202, %s218
      %p220 = scmp.eq.s32.totalorder %s21, 0
      %p221 = por %p219, %p220
      %p222 = scmp.le.s32.totalorder 1, %s15
      %p223 = scmp.lt.s32.totalorder %s15, 3
      %p224 = pnand %p222, %p223
      %p225 = pneg %p224
      // Predicated region
      $region9: #{batchnorm_block_forward.1} parent=5 // pred_check
        _
      $region10: #{batchnorm_block_forward.1} parent=5 // pred_check_branch
        %227 = sbr.rel (%p224) target = $region12
      $region11: #{batchnorm_block_forward.1} parent=5 // pred_region
        %s228 = ssub.s32 %s15, 1
        // Predicated region
        $region13: #{batchnorm_block_forward.1} parent=11 // pred_check
          %p229 = pneg %p62
        $region14: #{batchnorm_block_forward.1} parent=11 // pred_check_branch
          %231 = sbr.rel (%p229) target = $region16
        $region15: #{batchnorm_block_forward.1} parent=11 // pred_region
          _
        $region16: #{batchnorm_block_forward.1} parent=11 // pred_fallthru
          _
        // Predicated region
        $region17: #{batchnorm_block_forward.1} parent=11 // pred_check
          %p232 = pneg %p83
        $region18: #{batchnorm_block_forward.1} parent=11 // pred_check_branch
          %234 = sbr.rel (%p232) target = $region20
        $region19: #{batchnorm_block_forward.1} parent=11 // pred_region
          _
        $region20: #{batchnorm_block_forward.1} parent=11 // pred_fallthru
          _
        // Predicated region
        $region21: #{batchnorm_block_forward.1} parent=11 // pred_check
          %p235 = pneg %p104
        $region22: #{batchnorm_block_forward.1} parent=11 // pred_check_branch
          %237 = sbr.rel (%p235) target = $region24
        $region23: #{batchnorm_block_forward.1} parent=11 // pred_region
          _
        $region24: #{batchnorm_block_forward.1} parent=11 // pred_fallthru
          _
        // Predicated region
        $region25: #{batchnorm_block_forward.1} parent=11 // pred_check
          %p238 = pneg %p125
        $region26: #{batchnorm_block_forward.1} parent=11 // pred_check_branch
          %240 = sbr.rel (%p238) target = $region28
        $region27: #{batchnorm_block_forward.1} parent=11 // pred_region
          _
        $region28: #{batchnorm_block_forward.1} parent=11 // pred_fallthru
          _
        // Predicated region
        $region29: #{batchnorm_block_forward.1} parent=11 // pred_check
          %p241 = pneg %p146
        $region30: #{batchnorm_block_forward.1} parent=11 // pred_check_branch
          %243 = sbr.rel (%p241) target = $region32
        $region31: #{batchnorm_block_forward.1} parent=11 // pred_region
          _
        $region32: #{batchnorm_block_forward.1} parent=11 // pred_fallthru
          _
        // Predicated region
        $region33: #{batchnorm_block_forward.1} parent=11 // pred_check
          %p244 = pneg %p167
        $region34: #{batchnorm_block_forward.1} parent=11 // pred_check_branch
          %246 = sbr.rel (%p244) target = $region36
        $region35: #{batchnorm_block_forward.1} parent=11 // pred_region
          _
        $region36: #{batchnorm_block_forward.1} parent=11 // pred_fallthru
          _
        // Predicated region
        $region37: #{batchnorm_block_forward.1} parent=11 // pred_check
          %p247 = pneg %p188
        $region38: #{batchnorm_block_forward.1} parent=11 // pred_check_branch
          %249 = sbr.rel (%p247) target = $region40
        $region39: #{batchnorm_block_forward.1} parent=11 // pred_region
          %s251 = ssub.s32 16, 16
          %252 = vsyncadd [#allocation5], %s251
          %s254 = sshll.u32 %s7, 4
          %s255 = int_to_ptr.vmem [resolvable:$true] %s254
          %257 = dma.vmem_to_smem %s255, 16, [#allocation4], [#allocation5]
        $region40: #{batchnorm_block_forward.1} parent=11 // pred_fallthru
          _
      $region12: #{batchnorm_block_forward.1} parent=5 // pred_fallthru
        _
      %p258 = scmp.lt.s32.totalorder %s15, 2
      // Predicated region
      $region41: #{batchnorm_block_forward.1} parent=5 // pred_check
        %p259 = pneg %p258
      $region42: #{batchnorm_block_forward.1} parent=5 // pred_check_branch
        %261 = sbr.rel (%p259) target = $region44
      $region43: #{batchnorm_block_forward.1} parent=5 // pred_region
        // Predicated region
        $region45: #{batchnorm_block_forward.1} parent=43 // pred_check
          %p262 = pneg %p35
        $region46: #{batchnorm_block_forward.1} parent=43 // pred_check_branch
          %264 = sbr.rel (%p262) target = $region48
        $region47: #{batchnorm_block_forward.1} parent=43 // pred_region
          %p265 = scmp.lt.s32.totalorder %s15, 1
          %s266 = scalar_select %p265, %s15, 1
          %s267 = smul.addr %s266, 2
          %s268 = smul.addr %s267, 8
          %s269 = scalar_lea.vmem %s0, %s268
        $region48: #{batchnorm_block_forward.1} parent=43 // pred_fallthru
          _
      $region44: #{batchnorm_block_forward.1} parent=5 // pred_fallthru
        _
      %p270 = scmp.le.s32.totalorder 1, %s15
      %p271 = scmp.lt.s32.totalorder %s15, 3
      %p272 = pnand %p270, %p271
      %p273 = pneg %p272
      // Predicated region
      $region49: #{batchnorm_block_forward.1} parent=5 // pred_check
        _
      $region50: #{batchnorm_block_forward.1} parent=5 // pred_check_branch
        %275 = sbr.rel (%p272) target = $region52
      $region51: #{batchnorm_block_forward.1} parent=5 // pred_region
        %s276 = ssub.s32 %s15, 1
        // Predicated region
        $region53: #{batchnorm_block_forward.1} parent=51 // pred_check
          %p277 = pneg %p188
        $region54: #{batchnorm_block_forward.1} parent=51 // pred_check_branch
          %279 = sbr.rel (%p277) target = $region56
        $region55: #{batchnorm_block_forward.1} parent=51 // pred_region
          %280 = dma.done [#allocation5], 16
        $region56: #{batchnorm_block_forward.1} parent=51 // pred_fallthru
          _
        %281 = sfence
        %p282 = scmp.lt.s32.totalorder %s20, 1
        %s283 = scalar_select %p282, %s20, 1
        %s284 = smul.addr %s283, 2
        %s285 = smul.addr %s284, 8
        %s286 = scalar_lea.vmem %s0, %s285
        %p287 = pneg %p41
        %p288 = pneg %p38
        %p289 = pneg %p62
        %p290 = pneg %p59
        %p291 = pneg %p83
        %p292 = pneg %p80
        %p293 = pneg %p104
        %p294 = pneg %p101
        %p295 = pneg %p125
        %p296 = pneg %p122
        %p297 = pneg %p146
        %p298 = pneg %p143
        %p299 = pneg %p167
        %p300 = pneg %p164
        %p301 = pneg %p188
        %p302 = pneg %p185
        %p303 = pneg %p214
        %p304 = pneg %p211
        %p305 = scmp.lt.s32.totalorder %s20, 1
        %s306 = scalar_select %p305, %s20, 1
        %s307 = smul.addr %s306, 2
        %s308 = smul.addr %s307, 8
        %s309 = scalar_lea.vmem %s8, %s308
        %p310 = scmp.lt.s32.totalorder %s20, 1
        %s311 = scalar_select %p310, %s20, 1
        %s312 = smul.addr %s311, 2
        %s313 = smul.addr %s312, 8
        %s314 = scalar_lea.vmem %s0, %s313
        %p315 = scmp.lt.s32.totalorder %s20, 1
        %s316 = scalar_select %p315, %s20, 1
        %s317 = smul.addr %s316, 2
        %s318 = smul.addr %s317, 8
        %s319 = scalar_lea.vmem %s8, %s318
        %vm320 = vcmask 523264
        %321 = vst.msk [vmem:[#allocation2] sm:$0xff] %vm320, 0.0
        %322 = vst.msk [vmem:[#allocation2 + $0x8] sm:$0xff] %vm320, 0.0
        %vm323 = vcmask 519168
        %324 = vst.msk [vmem:[#allocation2 + $0x10] sm:$0xf] %vm323, 0.0
        %v325 = vld [vmem:[%s314] sm:$0xff]
        %v326 = vld [vmem:[%s314 + $0x8] sm:$0xff]
        %327 = vst.msk [vmem:[#allocation2 + $0x2] sm:$0xff] %vm320, %v325
        %328 = vst.msk [vmem:[#allocation2 + $0xa] sm:$0xff] %vm320, %v326
        %s329 = sld [smem:[#allocation4]]
        %v330 = vld [vmem:[%s4] sm:$0x1]
        %v332 = vlaneseq
        %v333 = vshrl.u32 %v332, 7
        %v334 = vsub.s32 0, %v333
        %v335 = vrot.slane %v330, %v334
        %v337 = vadd.f32 %v335, 0.0
        %v338 = vld [vmem:[#allocation2] sm:$0xff]
        %v339 = vld [vmem:[#allocation2 + $0x8] sm:$0xff]
        %v340 = vld [vmem:[%s1] sm:$0xff]
        %v341 = vld [vmem:[%s1 + $0x8] sm:$0xff]
        %v342 = vld [vmem:[%s1 + $0x10] sm:$0xff]
        %v343 = vld [vmem:[%s1 + $0x18] sm:$0xff]
        %v344 = vld [vmem:[%s1 + $0x20] sm:$0xff]
        %v345 = vld [vmem:[%s1 + $0x28] sm:$0xff]
        %v346 = vld [vmem:[%s1 + $0x30] sm:$0xff]
        %v347 = vld [vmem:[%s1 + $0x38] sm:$0xff]
        %v349 = vsel %vm320, %v338, 0
        %v352 = vsel %vm320, %v339, 0
        %354 = vmatprep.subr.mxu0 0.0
        %355 = vmatpush1.msra.mxu0 0.0
        %356 = vmatprep.subr.mxu0 0.0
        %357 = vmatpush1.msra.mxu0 0.0
        %358 = vmatprep.subr.mxu0 0.0
        %359 = vmatpush1.msra.mxu0 0.0
        %360 = vmatprep.subr.mxu0 0.0
        %361 = vmatpush1.msra.mxu0 0.0
        %362 = vmatprep.subr.mxu0 0.0
        %363 = vmatpush1.msra.mxu0 0.0
        %364 = vmatprep.subr.mxu0 0.0
        %365 = vmatpush1.msra.mxu0 0.0
        %366 = vmatprep.subr.mxu0 0.0
        %367 = vmatpush1.msra.mxu0 0.0
        %368 = vmatprep.subr.mxu0 0.0
        %369 = vmatpush1.msra.mxu0 0.0
        %370 = vmatprep.subr.mxu0 0.0
        %371 = vmatpush1.msra.mxu0 %v347
        %372 = vmatprep.subr.mxu0 0.0
        %373 = vmatpush1.msra.mxu0 %v346
        %374 = vmatprep.subr.mxu0 0.0
        %375 = vmatpush1.msra.mxu0 %v345
        %376 = vmatprep.subr.mxu0 0.0
        %377 = vmatpush1.msra.mxu0 %v344
        %378 = vmatprep.subr.mxu0 0.0
        %379 = vmatpush1.msra.mxu0 %v343
        %380 = vmatprep.subr.mxu0 0.0
        %381 = vmatpush1.msra.mxu0 %v342
        %382 = vmatprep.subr.mxu0 0.0
        %383 = vmatpush1.msra.mxu0 %v341
        %384 = vmatprep.subr.mxu0 0.0
        %385 = vmatpush1.msra.mxu0 %v340
        %386 = vmatprep.subr.mxu0 0.0
        %387 = vmatpush2.msra.mxu0 0.0
        %388 = vmatprep.subr.mxu0 0.0
        %389 = vmatpush2.msra.mxu0 0.0
        %390 = vmatprep.subr.mxu0 0.0
        %391 = vmatpush2.msra.mxu0 0.0
        %392 = vmatprep.subr.mxu0 0.0
        %393 = vmatpush2.msra.mxu0 0.0
        %394 = vmatprep.subr.mxu0 0.0
        %395 = vmatpush2.msra.mxu0 0.0
        %396 = vmatprep.subr.mxu0 0.0
        %397 = vmatpush2.msra.mxu0 0.0
        %398 = vmatprep.subr.mxu0 0.0
        %399 = vmatpush2.msra.mxu0 0.0
        %400 = vmatprep.subr.mxu0 0.0
        %401 = vmatpush2.msra.mxu0 0.0
        %402 = vmatprep.subr.mxu0 0.0
        %403 = vmatpush2.msra.mxu0 0.0
        %404 = vmatprep.subr.mxu0 0.0
        %405 = vmatpush2.msra.mxu0 0.0
        %406 = vmatprep.subr.mxu0 0.0
        %407 = vmatpush2.msra.mxu0 0.0
        %408 = vmatprep.subr.mxu0 0.0
        %409 = vmatpush2.msra.mxu0 0.0
        %410 = vmatprep.subr.mxu0 0.0
        %411 = vmatpush2.msra.mxu0 0.0
        %412 = vmatprep.subr.mxu0 0.0
        %413 = vmatpush2.msra.mxu0 0.0
        %414 = vmatprep.subr.mxu0 0.0
        %415 = vmatpush2.msra.mxu0 0.0
        %416 = vmatprep.subr.mxu0 0.0
        %417 = vmatpush2.msra.mxu0 0.0
        %418 = vmatprep.mubr.f32.mxu0 0.0
        %419 = vmatmul.mubr.f32.gmra.mxu0 %v349
        %v420 = vpop.f32.mrf.mxu0
        %v421 = vadd.f32 0.0, %v420
        %v422 = vpop.f32.mrf.mxu0
        %423 = vmatprep.mubr.f32.mxu0 0.0
        %424 = vmatmul.mubr.f32.gmra.mxu0 %v352
        %v425 = vpop.f32.mrf.mxu0
        %v426 = vadd.f32 0.0, %v425
        %v427 = vpop.f32.mrf.mxu0
        %428 = vdwg.mxu0
        %v429 = vadd.f32 %v337, %v421
        %v430 = vadd.f32 %v337, %v426
        %v431 = vld [vmem:[#allocation2 + $0x1] sm:$0xff]
        %v432 = vld [vmem:[#allocation2 + $0x9] sm:$0xff]
        %s433 = scalar_lea.vmem %s1, 64
        %v434 = vld [vmem:[%s433] sm:$0xff]
        %v435 = vld [vmem:[%s433 + $0x8] sm:$0xff]
        %v436 = vld [vmem:[%s433 + $0x10] sm:$0xff]
        %v437 = vld [vmem:[%s433 + $0x18] sm:$0xff]
        %v438 = vld [vmem:[%s433 + $0x20] sm:$0xff]
        %v439 = vld [vmem:[%s433 + $0x28] sm:$0xff]
        %v440 = vld [vmem:[%s433 + $0x30] sm:$0xff]
        %v441 = vld [vmem:[%s433 + $0x38] sm:$0xff]
        %v443 = vsel %vm320, %v431, 0
        %v446 = vsel %vm320, %v432, 0
        %448 = vmatprep.subr.mxu0 0.0
        %449 = vmatpush1.msra.mxu0 0.0
        %450 = vmatprep.subr.mxu0 0.0
        %451 = vmatpush1.msra.mxu0 0.0
        %452 = vmatprep.subr.mxu0 0.0
        %453 = vmatpush1.msra.mxu0 0.0
        %454 = vmatprep.subr.mxu0 0.0
        %455 = vmatpush1.msra.mxu0 0.0
        %456 = vmatprep.subr.mxu0 0.0
        %457 = vmatpush1.msra.mxu0 0.0
        %458 = vmatprep.subr.mxu0 0.0
        %459 = vmatpush1.msra.mxu0 0.0
        %460 = vmatprep.subr.mxu0 0.0
        %461 = vmatpush1.msra.mxu0 0.0
        %462 = vmatprep.subr.mxu0 0.0
        %463 = vmatpush1.msra.mxu0 0.0
        %464 = vmatprep.subr.mxu0 0.0
        %465 = vmatpush1.msra.mxu0 %v441
        %466 = vmatprep.subr.mxu0 0.0
        %467 = vmatpush1.msra.mxu0 %v440
        %468 = vmatprep.subr.mxu0 0.0
        %469 = vmatpush1.msra.mxu0 %v439
        %470 = vmatprep.subr.mxu0 0.0
        %471 = vmatpush1.msra.mxu0 %v438
        %472 = vmatprep.subr.mxu0 0.0
        %473 = vmatpush1.msra.mxu0 %v437
        %474 = vmatprep.subr.mxu0 0.0
        %475 = vmatpush1.msra.mxu0 %v436
        %476 = vmatprep.subr.mxu0 0.0
        %477 = vmatpush1.msra.mxu0 %v435
        %478 = vmatprep.subr.mxu0 0.0
        %479 = vmatpush1.msra.mxu0 %v434
        %480 = vmatprep.subr.mxu0 0.0
        %481 = vmatpush2.msra.mxu0 0.0
        %482 = vmatprep.subr.mxu0 0.0
        %483 = vmatpush2.msra.mxu0 0.0
        %484 = vmatprep.subr.mxu0 0.0
        %485 = vmatpush2.msra.mxu0 0.0
        %486 = vmatprep.subr.mxu0 0.0
        %487 = vmatpush2.msra.mxu0 0.0
        %488 = vmatprep.subr.mxu0 0.0
        %489 = vmatpush2.msra.mxu0 0.0
        %490 = vmatprep.subr.mxu0 0.0
        %491 = vmatpush2.msra.mxu0 0.0
        %492 = vmatprep.subr.mxu0 0.0
        %493 = vmatpush2.msra.mxu0 0.0
        %494 = vmatprep.subr.mxu0 0.0
        %495 = vmatpush2.msra.mxu0 0.0
        %496 = vmatprep.subr.mxu0 0.0
        %497 = vmatpush2.msra.mxu0 0.0
        %498 = vmatprep.subr.mxu0 0.0
        %499 = vmatpush2.msra.mxu0 0.0
        %500 = vmatprep.subr.mxu0 0.0
        %501 = vmatpush2.msra.mxu0 0.0
        %502 = vmatprep.subr.mxu0 0.0
        %503 = vmatpush2.msra.mxu0 0.0
        %504 = vmatprep.subr.mxu0 0.0
        %505 = vmatpush2.msra.mxu0 0.0
        %506 = vmatprep.subr.mxu0 0.0
        %507 = vmatpush2.msra.mxu0 0.0
        %508 = vmatprep.subr.mxu0 0.0
        %509 = vmatpush2.msra.mxu0 0.0
        %510 = vmatprep.subr.mxu0 0.0
        %511 = vmatpush2.msra.mxu0 0.0
        %512 = vmatprep.mubr.f32.mxu0 0.0
        %513 = vmatmul.mubr.f32.gmra.mxu0 %v443
        %v514 = vpop.f32.mrf.mxu0
        %v515 = vadd.f32 0.0, %v514
        %v516 = vpop.f32.mrf.mxu0
        %517 = vmatprep.mubr.f32.mxu0 0.0
        %518 = vmatmul.mubr.f32.gmra.mxu0 %v446
        %v519 = vpop.f32.mrf.mxu0
        %v520 = vadd.f32 0.0, %v519
        %v521 = vpop.f32.mrf.mxu0
        %522 = vdwg.mxu0
        %v523 = vadd.f32 %v429, %v515
        %v524 = vadd.f32 %v430, %v520
        %v525 = vld [vmem:[#allocation2 + $0x2] sm:$0xff]
        %v526 = vld [vmem:[#allocation2 + $0xa] sm:$0xff]
        %s527 = scalar_lea.vmem %s1, 128
        %v528 = vld [vmem:[%s527] sm:$0xff]
        %v529 = vld [vmem:[%s527 + $0x8] sm:$0xff]
        %v530 = vld [vmem:[%s527 + $0x10] sm:$0xff]
        %v531 = vld [vmem:[%s527 + $0x18] sm:$0xff]
        %v532 = vld [vmem:[%s527 + $0x20] sm:$0xff]
        %v533 = vld [vmem:[%s527 + $0x28] sm:$0xff]
        %v534 = vld [vmem:[%s527 + $0x30] sm:$0xff]
        %v535 = vld [vmem:[%s527 + $0x38] sm:$0xff]
        %v537 = vsel %vm320, %v525, 0
        %v540 = vsel %vm320, %v526, 0
        %542 = vmatprep.subr.mxu0 0.0
        %543 = vmatpush1.msra.mxu0 0.0
        %544 = vmatprep.subr.mxu0 0.0
        %545 = vmatpush1.msra.mxu0 0.0
        %546 = vmatprep.subr.mxu0 0.0
        %547 = vmatpush1.msra.mxu0 0.0
        %548 = vmatprep.subr.mxu0 0.0
        %549 = vmatpush1.msra.mxu0 0.0
        %550 = vmatprep.subr.mxu0 0.0
        %551 = vmatpush1.msra.mxu0 0.0
        %552 = vmatprep.subr.mxu0 0.0
        %553 = vmatpush1.msra.mxu0 0.0
        %554 = vmatprep.subr.mxu0 0.0
        %555 = vmatpush1.msra.mxu0 0.0
        %556 = vmatprep.subr.mxu0 0.0
        %557 = vmatpush1.msra.mxu0 0.0
        %558 = vmatprep.subr.mxu0 0.0
        %559 = vmatpush1.msra.mxu0 %v535
        %560 = vmatprep.subr.mxu0 0.0
        %561 = vmatpush1.msra.mxu0 %v534
        %562 = vmatprep.subr.mxu0 0.0
        %563 = vmatpush1.msra.mxu0 %v533
        %564 = vmatprep.subr.mxu0 0.0
        %565 = vmatpush1.msra.mxu0 %v532
        %566 = vmatprep.subr.mxu0 0.0
        %567 = vmatpush1.msra.mxu0 %v531
        %568 = vmatprep.subr.mxu0 0.0
        %569 = vmatpush1.msra.mxu0 %v530
        %570 = vmatprep.subr.mxu0 0.0
        %571 = vmatpush1.msra.mxu0 %v529
        %572 = vmatprep.subr.mxu0 0.0
        %573 = vmatpush1.msra.mxu0 %v528
        %574 = vmatprep.subr.mxu0 0.0
        %575 = vmatpush2.msra.mxu0 0.0
        %576 = vmatprep.subr.mxu0 0.0
        %577 = vmatpush2.msra.mxu0 0.0
        %578 = vmatprep.subr.mxu0 0.0
        %579 = vmatpush2.msra.mxu0 0.0
        %580 = vmatprep.subr.mxu0 0.0
        %581 = vmatpush2.msra.mxu0 0.0
        %582 = vmatprep.subr.mxu0 0.0
        %583 = vmatpush2.msra.mxu0 0.0
        %584 = vmatprep.subr.mxu0 0.0
        %585 = vmatpush2.msra.mxu0 0.0
        %586 = vmatprep.subr.mxu0 0.0
        %587 = vmatpush2.msra.mxu0 0.0
        %588 = vmatprep.subr.mxu0 0.0
        %589 = vmatpush2.msra.mxu0 0.0
        %590 = vmatprep.subr.mxu0 0.0
        %591 = vmatpush2.msra.mxu0 0.0
        %592 = vmatprep.subr.mxu0 0.0
        %593 = vmatpush2.msra.mxu0 0.0
        %594 = vmatprep.subr.mxu0 0.0
        %595 = vmatpush2.msra.mxu0 0.0
        %596 = vmatprep.subr.mxu0 0.0
        %597 = vmatpush2.msra.mxu0 0.0
        %598 = vmatprep.subr.mxu0 0.0
        %599 = vmatpush2.msra.mxu0 0.0
        %600 = vmatprep.subr.mxu0 0.0
        %601 = vmatpush2.msra.mxu0 0.0
        %602 = vmatprep.subr.mxu0 0.0
        %603 = vmatpush2.msra.mxu0 0.0
        %604 = vmatprep.subr.mxu0 0.0
        %605 = vmatpush2.msra.mxu0 0.0
        %606 = vmatprep.mubr.f32.mxu0 0.0
        %607 = vmatmul.mubr.f32.gmra.mxu0 %v537
        %v608 = vpop.f32.mrf.mxu0
        %v609 = vadd.f32 0.0, %v608
        %v610 = vpop.f32.mrf.mxu0
        %611 = vmatprep.mubr.f32.mxu0 0.0
        %612 = vmatmul.mubr.f32.gmra.mxu0 %v540
        %v613 = vpop.f32.mrf.mxu0
        %v614 = vadd.f32 0.0, %v613
        %v615 = vpop.f32.mrf.mxu0
        %616 = vdwg.mxu0
        %v617 = vadd.f32 %v523, %v609
        %v618 = vadd.f32 %v524, %v614
        %v619 = vld [vmem:[#allocation2 + $0x3] sm:$0xff]
        %v620 = vld [vmem:[#allocation2 + $0xb] sm:$0xff]
        %s621 = scalar_lea.vmem %s1, 192
        %v622 = vld [vmem:[%s621] sm:$0xff]
        %v623 = vld [vmem:[%s621 + $0x8] sm:$0xff]
        %v624 = vld [vmem:[%s621 + $0x10] sm:$0xff]
        %v625 = vld [vmem:[%s621 + $0x18] sm:$0xff]
        %v626 = vld [vmem:[%s621 + $0x20] sm:$0xff]
        %v627 = vld [vmem:[%s621 + $0x28] sm:$0xff]
        %v628 = vld [vmem:[%s621 + $0x30] sm:$0xff]
        %v629 = vld [vmem:[%s621 + $0x38] sm:$0xff]
        %v631 = vsel %vm320, %v619, 0
        %v634 = vsel %vm320, %v620, 0
        %636 = vmatprep.subr.mxu0 0.0
        %637 = vmatpush1.msra.mxu0 0.0
        %638 = vmatprep.subr.mxu0 0.0
        %639 = vmatpush1.msra.mxu0 0.0
        %640 = vmatprep.subr.mxu0 0.0
        %641 = vmatpush1.msra.mxu0 0.0
        %642 = vmatprep.subr.mxu0 0.0
        %643 = vmatpush1.msra.mxu0 0.0
        %644 = vmatprep.subr.mxu0 0.0
        %645 = vmatpush1.msra.mxu0 0.0
        %646 = vmatprep.subr.mxu0 0.0
        %647 = vmatpush1.msra.mxu0 0.0
        %648 = vmatprep.subr.mxu0 0.0
        %649 = vmatpush1.msra.mxu0 0.0
        %650 = vmatprep.subr.mxu0 0.0
        %651 = vmatpush1.msra.mxu0 0.0
        %652 = vmatprep.subr.mxu0 0.0
        %653 = vmatpush1.msra.mxu0 %v629
        %654 = vmatprep.subr.mxu0 0.0
        %655 = vmatpush1.msra.mxu0 %v628
        %656 = vmatprep.subr.mxu0 0.0
        %657 = vmatpush1.msra.mxu0 %v627
        %658 = vmatprep.subr.mxu0 0.0
        %659 = vmatpush1.msra.mxu0 %v626
        %660 = vmatprep.subr.mxu0 0.0
        %661 = vmatpush1.msra.mxu0 %v625
        %662 = vmatprep.subr.mxu0 0.0
        %663 = vmatpush1.msra.mxu0 %v624
        %664 = vmatprep.subr.mxu0 0.0
        %665 = vmatpush1.msra.mxu0 %v623
        %666 = vmatprep.subr.mxu0 0.0
        %667 = vmatpush1.msra.mxu0 %v622
        %668 = vmatprep.subr.mxu0 0.0
        %669 = vmatpush2.msra.mxu0 0.0
        %670 = vmatprep.subr.mxu0 0.0
        %671 = vmatpush2.msra.mxu0 0.0
        %672 = vmatprep.subr.mxu0 0.0
        %673 = vmatpush2.msra.mxu0 0.0
        %674 = vmatprep.subr.mxu0 0.0
        %675 = vmatpush2.msra.mxu0 0.0
        %676 = vmatprep.subr.mxu0 0.0
        %677 = vmatpush2.msra.mxu0 0.0
        %678 = vmatprep.subr.mxu0 0.0
        %679 = vmatpush2.msra.mxu0 0.0
        %680 = vmatprep.subr.mxu0 0.0
        %681 = vmatpush2.msra.mxu0 0.0
        %682 = vmatprep.subr.mxu0 0.0
        %683 = vmatpush2.msra.mxu0 0.0
        %684 = vmatprep.subr.mxu0 0.0
        %685 = vmatpush2.msra.mxu0 0.0
        %686 = vmatprep.subr.mxu0 0.0
        %687 = vmatpush2.msra.mxu0 0.0
        %688 = vmatprep.subr.mxu0 0.0
        %689 = vmatpush2.msra.mxu0 0.0
        %690 = vmatprep.subr.mxu0 0.0
        %691 = vmatpush2.msra.mxu0 0.0
        %692 = vmatprep.subr.mxu0 0.0
        %693 = vmatpush2.msra.mxu0 0.0
        %694 = vmatprep.subr.mxu0 0.0
        %695 = vmatpush2.msra.mxu0 0.0
        %696 = vmatprep.subr.mxu0 0.0
        %697 = vmatpush2.msra.mxu0 0.0
        %698 = vmatprep.subr.mxu0 0.0
        %699 = vmatpush2.msra.mxu0 0.0
        %700 = vmatprep.mubr.f32.mxu0 0.0
        %701 = vmatmul.mubr.f32.gmra.mxu0 %v631
        %v702 = vpop.f32.mrf.mxu0
        %v703 = vadd.f32 0.0, %v702
        %v704 = vpop.f32.mrf.mxu0
        %705 = vmatprep.mubr.f32.mxu0 0.0
        %706 = vmatmul.mubr.f32.gmra.mxu0 %v634
        %v707 = vpop.f32.mrf.mxu0
        %v708 = vadd.f32 0.0, %v707
        %v709 = vpop.f32.mrf.mxu0
        %710 = vdwg.mxu0
        %v711 = vadd.f32 %v617, %v703
        %v712 = vadd.f32 %v618, %v708
        %v713 = vld [vmem:[#allocation2 + $0x4] sm:$0xff]
        %v714 = vld [vmem:[#allocation2 + $0xc] sm:$0xff]
        %s715 = scalar_lea.vmem %s1, 256
        %v716 = vld [vmem:[%s715] sm:$0xff]
        %v717 = vld [vmem:[%s715 + $0x8] sm:$0xff]
        %v718 = vld [vmem:[%s715 + $0x10] sm:$0xff]
        %v719 = vld [vmem:[%s715 + $0x18] sm:$0xff]
        %v720 = vld [vmem:[%s715 + $0x20] sm:$0xff]
        %v721 = vld [vmem:[%s715 + $0x28] sm:$0xff]
        %v722 = vld [vmem:[%s715 + $0x30] sm:$0xff]
        %v723 = vld [vmem:[%s715 + $0x38] sm:$0xff]
        %v725 = vsel %vm320, %v713, 0
        %v728 = vsel %vm320, %v714, 0
        %730 = vmatprep.subr.mxu0 0.0
        %731 = vmatpush1.msra.mxu0 0.0
        %732 = vmatprep.subr.mxu0 0.0
        %733 = vmatpush1.msra.mxu0 0.0
        %734 = vmatprep.subr.mxu0 0.0
        %735 = vmatpush1.msra.mxu0 0.0
        %736 = vmatprep.subr.mxu0 0.0
        %737 = vmatpush1.msra.mxu0 0.0
        %738 = vmatprep.subr.mxu0 0.0
        %739 = vmatpush1.msra.mxu0 0.0
        %740 = vmatprep.subr.mxu0 0.0
        %741 = vmatpush1.msra.mxu0 0.0
        %742 = vmatprep.subr.mxu0 0.0
        %743 = vmatpush1.msra.mxu0 0.0
        %744 = vmatprep.subr.mxu0 0.0
        %745 = vmatpush1.msra.mxu0 0.0
        %746 = vmatprep.subr.mxu0 0.0
        %747 = vmatpush1.msra.mxu0 %v723
        %748 = vmatprep.subr.mxu0 0.0
        %749 = vmatpush1.msra.mxu0 %v722
        %750 = vmatprep.subr.mxu0 0.0
        %751 = vmatpush1.msra.mxu0 %v721
        %752 = vmatprep.subr.mxu0 0.0
        %753 = vmatpush1.msra.mxu0 %v720
        %754 = vmatprep.subr.mxu0 0.0
        %755 = vmatpush1.msra.mxu0 %v719
        %756 = vmatprep.subr.mxu0 0.0
        %757 = vmatpush1.msra.mxu0 %v718
        %758 = vmatprep.subr.mxu0 0.0
        %759 = vmatpush1.msra.mxu0 %v717
        %760 = vmatprep.subr.mxu0 0.0
        %761 = vmatpush1.msra.mxu0 %v716
        %762 = vmatprep.subr.mxu0 0.0
        %763 = vmatpush2.msra.mxu0 0.0
        %764 = vmatprep.subr.mxu0 0.0
        %765 = vmatpush2.msra.mxu0 0.0
        %766 = vmatprep.subr.mxu0 0.0
        %767 = vmatpush2.msra.mxu0 0.0
        %768 = vmatprep.subr.mxu0 0.0
        %769 = vmatpush2.msra.mxu0 0.0
        %770 = vmatprep.subr.mxu0 0.0
        %771 = vmatpush2.msra.mxu0 0.0
        %772 = vmatprep.subr.mxu0 0.0
        %773 = vmatpush2.msra.mxu0 0.0
        %774 = vmatprep.subr.mxu0 0.0
        %775 = vmatpush2.msra.mxu0 0.0
        %776 = vmatprep.subr.mxu0 0.0
        %777 = vmatpush2.msra.mxu0 0.0
        %778 = vmatprep.subr.mxu0 0.0
        %779 = vmatpush2.msra.mxu0 0.0
        %780 = vmatprep.subr.mxu0 0.0
        %781 = vmatpush2.msra.mxu0 0.0
        %782 = vmatprep.subr.mxu0 0.0
        %783 = vmatpush2.msra.mxu0 0.0
        %784 = vmatprep.subr.mxu0 0.0
        %785 = vmatpush2.msra.mxu0 0.0
        %786 = vmatprep.subr.mxu0 0.0
        %787 = vmatpush2.msra.mxu0 0.0
        %788 = vmatprep.subr.mxu0 0.0
        %789 = vmatpush2.msra.mxu0 0.0
        %790 = vmatprep.subr.mxu0 0.0
        %791 = vmatpush2.msra.mxu0 0.0
        %792 = vmatprep.subr.mxu0 0.0
        %793 = vmatpush2.msra.mxu0 0.0
        %794 = vmatprep.mubr.f32.mxu0 0.0
        %795 = vmatmul.mubr.f32.gmra.mxu0 %v725
        %v796 = vpop.f32.mrf.mxu0
        %v797 = vadd.f32 0.0, %v796
        %v798 = vpop.f32.mrf.mxu0
        %799 = vmatprep.mubr.f32.mxu0 0.0
        %800 = vmatmul.mubr.f32.gmra.mxu0 %v728
        %v801 = vpop.f32.mrf.mxu0
        %v802 = vadd.f32 0.0, %v801
        %v803 = vpop.f32.mrf.mxu0
        %804 = vdwg.mxu0
        %v805 = vadd.f32 %v711, %v797
        %v806 = vadd.f32 %v712, %v802
        %vm807 = vcmp.gt.f32.partialorder %v805, 0.0
        %vm808 = vcmp.gt.f32.partialorder %v806, 0.0
        %v809 = vstv %s329
        %v810 = vmul.f32 %v809, %v805
        %v811 = vmul.f32 %v809, %v806
        %v812 = vsel %vm807, %v805, %v810
        %v813 = vsel %vm808, %v806, %v811
        %814 = vst [vmem:[#allocation3] sm:$0xff] 0.0
        %815 = vst [vmem:[#allocation3 + $0x8] sm:$0xff] 0.0
        %816 = vst [vmem:[#allocation3 + $0x10] sm:$0x3] 0.0
        %817 = vst [vmem:[#allocation3 + $0x1] sm:$0xff] %v812
        %818 = vst [vmem:[#allocation3 + $0x9] sm:$0xff] %v813
        %s819 = sld [smem:[#allocation4 + $0x1]]
        %v820 = vld [vmem:[%s5] sm:$0x1]
        %v822 = vlaneseq
        %v823 = vshrl.u32 %v822, 7
        %v824 = vsub.s32 0, %v823
        %v825 = vrot.slane %v820, %v824
        %v827 = vadd.f32 %v825, 0.0
        %v828 = vld [vmem:[#allocation3] sm:$0xff]
        %v829 = vld [vmem:[#allocation3 + $0x8] sm:$0xff]
        %v830 = vld [vmem:[%s2] sm:$0xff]
        %v831 = vld [vmem:[%s2 + $0x8] sm:$0xff]
        %v832 = vld [vmem:[%s2 + $0x10] sm:$0xff]
        %v833 = vld [vmem:[%s2 + $0x18] sm:$0xff]
        %v834 = vld [vmem:[%s2 + $0x20] sm:$0xff]
        %v835 = vld [vmem:[%s2 + $0x28] sm:$0xff]
        %v836 = vld [vmem:[%s2 + $0x30] sm:$0xff]
        %v837 = vld [vmem:[%s2 + $0x38] sm:$0xff]
        %v838 = vld [vmem:[%s2 + $0x40] sm:$0xff]
        %v839 = vld [vmem:[%s2 + $0x48] sm:$0xff]
        %v840 = vld [vmem:[%s2 + $0x50] sm:$0xff]
        %v841 = vld [vmem:[%s2 + $0x58] sm:$0xff]
        %v842 = vld [vmem:[%s2 + $0x60] sm:$0xff]
        %v843 = vld [vmem:[%s2 + $0x68] sm:$0xff]
        %v844 = vld [vmem:[%s2 + $0x70] sm:$0xff]
        %v845 = vld [vmem:[%s2 + $0x78] sm:$0xff]
        %846 = vmatprep.subr.mxu0 0.0
        %847 = vmatpush1.msra.mxu0 %v845
        %848 = vmatprep.subr.mxu0 0.0
        %849 = vmatpush1.msra.mxu0 %v844
        %850 = vmatprep.subr.mxu0 0.0
        %851 = vmatpush1.msra.mxu0 %v843
        %852 = vmatprep.subr.mxu0 0.0
        %853 = vmatpush1.msra.mxu0 %v842
        %854 = vmatprep.subr.mxu0 0.0
        %855 = vmatpush1.msra.mxu0 %v841
        %856 = vmatprep.subr.mxu0 0.0
        %857 = vmatpush1.msra.mxu0 %v840
        %858 = vmatprep.subr.mxu0 0.0
        %859 = vmatpush1.msra.mxu0 %v839
        %860 = vmatprep.subr.mxu0 0.0
        %861 = vmatpush1.msra.mxu0 %v838
        %862 = vmatprep.subr.mxu0 0.0
        %863 = vmatpush1.msra.mxu0 %v837
        %864 = vmatprep.subr.mxu0 0.0
        %865 = vmatpush1.msra.mxu0 %v836
        %866 = vmatprep.subr.mxu0 0.0
        %867 = vmatpush1.msra.mxu0 %v835
        %868 = vmatprep.subr.mxu0 0.0
        %869 = vmatpush1.msra.mxu0 %v834
        %870 = vmatprep.subr.mxu0 0.0
        %871 = vmatpush1.msra.mxu0 %v833
        %872 = vmatprep.subr.mxu0 0.0
        %873 = vmatpush1.msra.mxu0 %v832
        %874 = vmatprep.subr.mxu0 0.0
        %875 = vmatpush1.msra.mxu0 %v831
        %876 = vmatprep.subr.mxu0 0.0
        %877 = vmatpush1.msra.mxu0 %v830
        %878 = vmatprep.subr.mxu0 0.0
        %879 = vmatpush2.msra.mxu0 0.0
        %880 = vmatprep.subr.mxu0 0.0
        %881 = vmatpush2.msra.mxu0 0.0
        %882 = vmatprep.subr.mxu0 0.0
        %883 = vmatpush2.msra.mxu0 0.0
        %884 = vmatprep.subr.mxu0 0.0
        %885 = vmatpush2.msra.mxu0 0.0
        %886 = vmatprep.subr.mxu0 0.0
        %887 = vmatpush2.msra.mxu0 0.0
        %888 = vmatprep.subr.mxu0 0.0
        %889 = vmatpush2.msra.mxu0 0.0
        %890 = vmatprep.subr.mxu0 0.0
        %891 = vmatpush2.msra.mxu0 0.0
        %892 = vmatprep.subr.mxu0 0.0
        %893 = vmatpush2.msra.mxu0 0.0
        %894 = vmatprep.subr.mxu0 0.0
        %895 = vmatpush2.msra.mxu0 0.0
        %896 = vmatprep.subr.mxu0 0.0
        %897 = vmatpush2.msra.mxu0 0.0
        %898 = vmatprep.subr.mxu0 0.0
        %899 = vmatpush2.msra.mxu0 0.0
        %900 = vmatprep.subr.mxu0 0.0
        %901 = vmatpush2.msra.mxu0 0.0
        %902 = vmatprep.subr.mxu0 0.0
        %903 = vmatpush2.msra.mxu0 0.0
        %904 = vmatprep.subr.mxu0 0.0
        %905 = vmatpush2.msra.mxu0 0.0
        %906 = vmatprep.subr.mxu0 0.0
        %907 = vmatpush2.msra.mxu0 0.0
        %908 = vmatprep.subr.mxu0 0.0
        %909 = vmatpush2.msra.mxu0 0.0
        %910 = vmatprep.mubr.f32.mxu0 0.0
        %911 = vmatmul.mubr.f32.gmra.mxu0 %v828
        %v912 = vpop.f32.mrf.mxu0
        %v913 = vadd.f32 0.0, %v912
        %v914 = vpop.f32.mrf.mxu0
        %915 = vmatprep.mubr.f32.mxu0 0.0
        %916 = vmatmul.mubr.f32.gmra.mxu0 %v829
        %v917 = vpop.f32.mrf.mxu0
        %v918 = vadd.f32 0.0, %v917
        %v919 = vpop.f32.mrf.mxu0
        %920 = vdwg.mxu0
        %v921 = vadd.f32 %v827, %v913
        %v922 = vadd.f32 %v827, %v918
        %v923 = vld [vmem:[#allocation3 + $0x1] sm:$0xff]
        %v924 = vld [vmem:[#allocation3 + $0x9] sm:$0xff]
        %s925 = scalar_lea.vmem %s2, 128
        %v926 = vld [vmem:[%s925] sm:$0xff]
        %v927 = vld [vmem:[%s925 + $0x8] sm:$0xff]
        %v928 = vld [vmem:[%s925 + $0x10] sm:$0xff]
        %v929 = vld [vmem:[%s925 + $0x18] sm:$0xff]
        %v930 = vld [vmem:[%s925 + $0x20] sm:$0xff]
        %v931 = vld [vmem:[%s925 + $0x28] sm:$0xff]
        %v932 = vld [vmem:[%s925 + $0x30] sm:$0xff]
        %v933 = vld [vmem:[%s925 + $0x38] sm:$0xff]
        %v934 = vld [vmem:[%s925 + $0x40] sm:$0xff]
        %v935 = vld [vmem:[%s925 + $0x48] sm:$0xff]
        %v936 = vld [vmem:[%s925 + $0x50] sm:$0xff]
        %v937 = vld [vmem:[%s925 + $0x58] sm:$0xff]
        %v938 = vld [vmem:[%s925 + $0x60] sm:$0xff]
        %v939 = vld [vmem:[%s925 + $0x68] sm:$0xff]
        %v940 = vld [vmem:[%s925 + $0x70] sm:$0xff]
        %v941 = vld [vmem:[%s925 + $0x78] sm:$0xff]
        %942 = vmatprep.subr.mxu0 0.0
        %943 = vmatpush1.msra.mxu0 %v941
        %944 = vmatprep.subr.mxu0 0.0
        %945 = vmatpush1.msra.mxu0 %v940
        %946 = vmatprep.subr.mxu0 0.0
        %947 = vmatpush1.msra.mxu0 %v939
        %948 = vmatprep.subr.mxu0 0.0
        %949 = vmatpush1.msra.mxu0 %v938
        %950 = vmatprep.subr.mxu0 0.0
        %951 = vmatpush1.msra.mxu0 %v937
        %952 = vmatprep.subr.mxu0 0.0
        %953 = vmatpush1.msra.mxu0 %v936
        %954 = vmatprep.subr.mxu0 0.0
        %955 = vmatpush1.msra.mxu0 %v935
        %956 = vmatprep.subr.mxu0 0.0
        %957 = vmatpush1.msra.mxu0 %v934
        %958 = vmatprep.subr.mxu0 0.0
        %959 = vmatpush1.msra.mxu0 %v933
        %960 = vmatprep.subr.mxu0 0.0
        %961 = vmatpush1.msra.mxu0 %v932
        %962 = vmatprep.subr.mxu0 0.0
        %963 = vmatpush1.msra.mxu0 %v931
        %964 = vmatprep.subr.mxu0 0.0
        %965 = vmatpush1.msra.mxu0 %v930
        %966 = vmatprep.subr.mxu0 0.0
        %967 = vmatpush1.msra.mxu0 %v929
        %968 = vmatprep.subr.mxu0 0.0
        %969 = vmatpush1.msra.mxu0 %v928
        %970 = vmatprep.subr.mxu0 0.0
        %971 = vmatpush1.msra.mxu0 %v927
        %972 = vmatprep.subr.mxu0 0.0
        %973 = vmatpush1.msra.mxu0 %v926
        %974 = vmatprep.subr.mxu0 0.0
        %975 = vmatpush2.msra.mxu0 0.0
        %976 = vmatprep.subr.mxu0 0.0
        %977 = vmatpush2.msra.mxu0 0.0
        %978 = vmatprep.subr.mxu0 0.0
        %979 = vmatpush2.msra.mxu0 0.0
        %980 = vmatprep.subr.mxu0 0.0
        %981 = vmatpush2.msra.mxu0 0.0
        %982 = vmatprep.subr.mxu0 0.0
        %983 = vmatpush2.msra.mxu0 0.0
        %984 = vmatprep.subr.mxu0 0.0
        %985 = vmatpush2.msra.mxu0 0.0
        %986 = vmatprep.subr.mxu0 0.0
        %987 = vmatpush2.msra.mxu0 0.0
        %988 = vmatprep.subr.mxu0 0.0
        %989 = vmatpush2.msra.mxu0 0.0
        %990 = vmatprep.subr.mxu0 0.0
        %991 = vmatpush2.msra.mxu0 0.0
        %992 = vmatprep.subr.mxu0 0.0
        %993 = vmatpush2.msra.mxu0 0.0
        %994 = vmatprep.subr.mxu0 0.0
        %995 = vmatpush2.msra.mxu0 0.0
        %996 = vmatprep.subr.mxu0 0.0
        %997 = vmatpush2.msra.mxu0 0.0
        %998 = vmatprep.subr.mxu0 0.0
        %999 = vmatpush2.msra.mxu0 0.0
        %1000 = vmatprep.subr.mxu0 0.0
        %1001 = vmatpush2.msra.mxu0 0.0
        %1002 = vmatprep.subr.mxu0 0.0
        %1003 = vmatpush2.msra.mxu0 0.0
        %1004 = vmatprep.subr.mxu0 0.0
        %1005 = vmatpush2.msra.mxu0 0.0
        %1006 = vmatprep.mubr.f32.mxu0 0.0
        %1007 = vmatmul.mubr.f32.gmra.mxu0 %v923
        %v1008 = vpop.f32.mrf.mxu0
        %v1009 = vadd.f32 0.0, %v1008
        %v1010 = vpop.f32.mrf.mxu0
        %1011 = vmatprep.mubr.f32.mxu0 0.0
        %1012 = vmatmul.mubr.f32.gmra.mxu0 %v924
        %v1013 = vpop.f32.mrf.mxu0
        %v1014 = vadd.f32 0.0, %v1013
        %v1015 = vpop.f32.mrf.mxu0
        %1016 = vdwg.mxu0
        %v1017 = vadd.f32 %v921, %v1009
        %v1018 = vadd.f32 %v922, %v1014
        %v1019 = vld [vmem:[#allocation3 + $0x2] sm:$0xff]
        %v1020 = vld [vmem:[#allocation3 + $0xa] sm:$0xff]
        %s1021 = scalar_lea.vmem %s2, 256
        %v1022 = vld [vmem:[%s1021] sm:$0xff]
        %v1023 = vld [vmem:[%s1021 + $0x8] sm:$0xff]
        %v1024 = vld [vmem:[%s1021 + $0x10] sm:$0xff]
        %v1025 = vld [vmem:[%s1021 + $0x18] sm:$0xff]
        %v1026 = vld [vmem:[%s1021 + $0x20] sm:$0xff]
        %v1027 = vld [vmem:[%s1021 + $0x28] sm:$0xff]
        %v1028 = vld [vmem:[%s1021 + $0x30] sm:$0xff]
        %v1029 = vld [vmem:[%s1021 + $0x38] sm:$0xff]
        %v1030 = vld [vmem:[%s1021 + $0x40] sm:$0xff]
        %v1031 = vld [vmem:[%s1021 + $0x48] sm:$0xff]
        %v1032 = vld [vmem:[%s1021 + $0x50] sm:$0xff]
        %v1033 = vld [vmem:[%s1021 + $0x58] sm:$0xff]
        %v1034 = vld [vmem:[%s1021 + $0x60] sm:$0xff]
        %v1035 = vld [vmem:[%s1021 + $0x68] sm:$0xff]
        %v1036 = vld [vmem:[%s1021 + $0x70] sm:$0xff]
        %v1037 = vld [vmem:[%s1021 + $0x78] sm:$0xff]
        %1038 = vmatprep.subr.mxu0 0.0
        %1039 = vmatpush1.msra.mxu0 %v1037
        %1040 = vmatprep.subr.mxu0 0.0
        %1041 = vmatpush1.msra.mxu0 %v1036
        %1042 = vmatprep.subr.mxu0 0.0
        %1043 = vmatpush1.msra.mxu0 %v1035
        %1044 = vmatprep.subr.mxu0 0.0
        %1045 = vmatpush1.msra.mxu0 %v1034
        %1046 = vmatprep.subr.mxu0 0.0
        %1047 = vmatpush1.msra.mxu0 %v1033
        %1048 = vmatprep.subr.mxu0 0.0
        %1049 = vmatpush1.msra.mxu0 %v1032
        %1050 = vmatprep.subr.mxu0 0.0
        %1051 = vmatpush1.msra.mxu0 %v1031
        %1052 = vmatprep.subr.mxu0 0.0
        %1053 = vmatpush1.msra.mxu0 %v1030
        %1054 = vmatprep.subr.mxu0 0.0
        %1055 = vmatpush1.msra.mxu0 %v1029
        %1056 = vmatprep.subr.mxu0 0.0
        %1057 = vmatpush1.msra.mxu0 %v1028
        %1058 = vmatprep.subr.mxu0 0.0
        %1059 = vmatpush1.msra.mxu0 %v1027
        %1060 = vmatprep.subr.mxu0 0.0
        %1061 = vmatpush1.msra.mxu0 %v1026
        %1062 = vmatprep.subr.mxu0 0.0
        %1063 = vmatpush1.msra.mxu0 %v1025
        %1064 = vmatprep.subr.mxu0 0.0
        %1065 = vmatpush1.msra.mxu0 %v1024
        %1066 = vmatprep.subr.mxu0 0.0
        %1067 = vmatpush1.msra.mxu0 %v1023
        %1068 = vmatprep.subr.mxu0 0.0
        %1069 = vmatpush1.msra.mxu0 %v1022
        %1070 = vmatprep.subr.mxu0 0.0
        %1071 = vmatpush2.msra.mxu0 0.0
        %1072 = vmatprep.subr.mxu0 0.0
        %1073 = vmatpush2.msra.mxu0 0.0
        %1074 = vmatprep.subr.mxu0 0.0
        %1075 = vmatpush2.msra.mxu0 0.0
        %1076 = vmatprep.subr.mxu0 0.0
        %1077 = vmatpush2.msra.mxu0 0.0
        %1078 = vmatprep.subr.mxu0 0.0
        %1079 = vmatpush2.msra.mxu0 0.0
        %1080 = vmatprep.subr.mxu0 0.0
        %1081 = vmatpush2.msra.mxu0 0.0
        %1082 = vmatprep.subr.mxu0 0.0
        %1083 = vmatpush2.msra.mxu0 0.0
        %1084 = vmatprep.subr.mxu0 0.0
        %1085 = vmatpush2.msra.mxu0 0.0
        %1086 = vmatprep.subr.mxu0 0.0
        %1087 = vmatpush2.msra.mxu0 0.0
        %1088 = vmatprep.subr.mxu0 0.0
        %1089 = vmatpush2.msra.mxu0 0.0
        %1090 = vmatprep.subr.mxu0 0.0
        %1091 = vmatpush2.msra.mxu0 0.0
        %1092 = vmatprep.subr.mxu0 0.0
        %1093 = vmatpush2.msra.mxu0 0.0
        %1094 = vmatprep.subr.mxu0 0.0
        %1095 = vmatpush2.msra.mxu0 0.0
        %1096 = vmatprep.subr.mxu0 0.0
        %1097 = vmatpush2.msra.mxu0 0.0
        %1098 = vmatprep.subr.mxu0 0.0
        %1099 = vmatpush2.msra.mxu0 0.0
        %1100 = vmatprep.subr.mxu0 0.0
        %1101 = vmatpush2.msra.mxu0 0.0
        %1102 = vmatprep.mubr.f32.mxu0 0.0
        %1103 = vmatmul.mubr.f32.gmra.mxu0 %v1019
        %v1104 = vpop.f32.mrf.mxu0
        %v1105 = vadd.f32 0.0, %v1104
        %v1106 = vpop.f32.mrf.mxu0
        %1107 = vmatprep.mubr.f32.mxu0 0.0
        %1108 = vmatmul.mubr.f32.gmra.mxu0 %v1020
        %v1109 = vpop.f32.mrf.mxu0
        %v1110 = vadd.f32 0.0, %v1109
        %v1111 = vpop.f32.mrf.mxu0
        %1112 = vdwg.mxu0
        %v1113 = vadd.f32 %v1017, %v1105
        %v1114 = vadd.f32 %v1018, %v1110
        %vm1115 = vcmp.gt.f32.partialorder %v1113, 0.0
        %vm1116 = vcmp.gt.f32.partialorder %v1114, 0.0
        %v1117 = vstv %s819
        %v1118 = vmul.f32 %v1117, %v1113
        %v1119 = vmul.f32 %v1117, %v1114
        %v1120 = vsel %vm1115, %v1113, %v1118
        %v1121 = vsel %vm1116, %v1114, %v1119
        %1122 = vst [vmem:[#allocation3 + $0x1] sm:$0xff] %v1120
        %1123 = vst [vmem:[#allocation3 + $0x9] sm:$0xff] %v1121
        %s1124 = sld [smem:[#allocation4 + $0x2]]
        %v1125 = vld [vmem:[%s6] sm:$0x1]
        %v1127 = vlaneseq
        %v1128 = vshrl.u32 %v1127, 7
        %v1129 = vsub.s32 0, %v1128
        %v1130 = vrot.slane %v1125, %v1129
        %v1132 = vadd.f32 %v1130, 0.0
        %v1133 = vld [vmem:[#allocation3] sm:$0xff]
        %v1134 = vld [vmem:[#allocation3 + $0x8] sm:$0xff]
        %v1135 = vld [vmem:[%s3] sm:$0xff]
        %v1136 = vld [vmem:[%s3 + $0x8] sm:$0xff]
        %v1137 = vld [vmem:[%s3 + $0x10] sm:$0xff]
        %v1138 = vld [vmem:[%s3 + $0x18] sm:$0xff]
        %v1139 = vld [vmem:[%s3 + $0x20] sm:$0xff]
        %v1140 = vld [vmem:[%s3 + $0x28] sm:$0xff]
        %v1141 = vld [vmem:[%s3 + $0x30] sm:$0xff]
        %v1142 = vld [vmem:[%s3 + $0x38] sm:$0xff]
        %v1143 = vld [vmem:[%s3 + $0x40] sm:$0xff]
        %v1144 = vld [vmem:[%s3 + $0x48] sm:$0xff]
        %v1145 = vld [vmem:[%s3 + $0x50] sm:$0xff]
        %v1146 = vld [vmem:[%s3 + $0x58] sm:$0xff]
        %v1147 = vld [vmem:[%s3 + $0x60] sm:$0xff]
        %v1148 = vld [vmem:[%s3 + $0x68] sm:$0xff]
        %v1149 = vld [vmem:[%s3 + $0x70] sm:$0xff]
        %v1150 = vld [vmem:[%s3 + $0x78] sm:$0xff]
        %1151 = vmatprep.subr.mxu0 0.0
        %1152 = vmatpush1.msra.mxu0 %v1150
        %1153 = vmatprep.subr.mxu0 0.0
        %1154 = vmatpush1.msra.mxu0 %v1149
        %1155 = vmatprep.subr.mxu0 0.0
        %1156 = vmatpush1.msra.mxu0 %v1148
        %1157 = vmatprep.subr.mxu0 0.0
        %1158 = vmatpush1.msra.mxu0 %v1147
        %1159 = vmatprep.subr.mxu0 0.0
        %1160 = vmatpush1.msra.mxu0 %v1146
        %1161 = vmatprep.subr.mxu0 0.0
        %1162 = vmatpush1.msra.mxu0 %v1145
        %1163 = vmatprep.subr.mxu0 0.0
        %1164 = vmatpush1.msra.mxu0 %v1144
        %1165 = vmatprep.subr.mxu0 0.0
        %1166 = vmatpush1.msra.mxu0 %v1143
        %1167 = vmatprep.subr.mxu0 0.0
        %1168 = vmatpush1.msra.mxu0 %v1142
        %1169 = vmatprep.subr.mxu0 0.0
        %1170 = vmatpush1.msra.mxu0 %v1141
        %1171 = vmatprep.subr.mxu0 0.0
        %1172 = vmatpush1.msra.mxu0 %v1140
        %1173 = vmatprep.subr.mxu0 0.0
        %1174 = vmatpush1.msra.mxu0 %v1139
        %1175 = vmatprep.subr.mxu0 0.0
        %1176 = vmatpush1.msra.mxu0 %v1138
        %1177 = vmatprep.subr.mxu0 0.0
        %1178 = vmatpush1.msra.mxu0 %v1137
        %1179 = vmatprep.subr.mxu0 0.0
        %1180 = vmatpush1.msra.mxu0 %v1136
        %1181 = vmatprep.subr.mxu0 0.0
        %1182 = vmatpush1.msra.mxu0 %v1135
        %1183 = vmatprep.subr.mxu0 0.0
        %1184 = vmatpush2.msra.mxu0 0.0
        %1185 = vmatprep.subr.mxu0 0.0
        %1186 = vmatpush2.msra.mxu0 0.0
        %1187 = vmatprep.subr.mxu0 0.0
        %1188 = vmatpush2.msra.mxu0 0.0
        %1189 = vmatprep.subr.mxu0 0.0
        %1190 = vmatpush2.msra.mxu0 0.0
        %1191 = vmatprep.subr.mxu0 0.0
        %1192 = vmatpush2.msra.mxu0 0.0
        %1193 = vmatprep.subr.mxu0 0.0
        %1194 = vmatpush2.msra.mxu0 0.0
        %1195 = vmatprep.subr.mxu0 0.0
        %1196 = vmatpush2.msra.mxu0 0.0
        %1197 = vmatprep.subr.mxu0 0.0
        %1198 = vmatpush2.msra.mxu0 0.0
        %1199 = vmatprep.subr.mxu0 0.0
        %1200 = vmatpush2.msra.mxu0 0.0
        %1201 = vmatprep.subr.mxu0 0.0
        %1202 = vmatpush2.msra.mxu0 0.0
        %1203 = vmatprep.subr.mxu0 0.0
        %1204 = vmatpush2.msra.mxu0 0.0
        %1205 = vmatprep.subr.mxu0 0.0
        %1206 = vmatpush2.msra.mxu0 0.0
        %1207 = vmatprep.subr.mxu0 0.0
        %1208 = vmatpush2.msra.mxu0 0.0
        %1209 = vmatprep.subr.mxu0 0.0
        %1210 = vmatpush2.msra.mxu0 0.0
        %1211 = vmatprep.subr.mxu0 0.0
        %1212 = vmatpush2.msra.mxu0 0.0
        %1213 = vmatprep.subr.mxu0 0.0
        %1214 = vmatpush2.msra.mxu0 0.0
        %1215 = vmatprep.mubr.f32.mxu0 0.0
        %1216 = vmatmul.mubr.f32.gmra.mxu0 %v1133
        %v1217 = vpop.f32.mrf.mxu0
        %v1218 = vadd.f32 0.0, %v1217
        %v1219 = vpop.f32.mrf.mxu0
        %1220 = vmatprep.mubr.f32.mxu0 0.0
        %1221 = vmatmul.mubr.f32.gmra.mxu0 %v1134
        %v1222 = vpop.f32.mrf.mxu0
        %v1223 = vadd.f32 0.0, %v1222
        %v1224 = vpop.f32.mrf.mxu0
        %1225 = vdwg.mxu0
        %v1226 = vadd.f32 %v1132, %v1218
        %v1227 = vadd.f32 %v1132, %v1223
        %v1228 = vld [vmem:[#allocation3 + $0x1] sm:$0xff]
        %v1229 = vld [vmem:[#allocation3 + $0x9] sm:$0xff]
        %s1230 = scalar_lea.vmem %s3, 128
        %v1231 = vld [vmem:[%s1230] sm:$0xff]
        %v1232 = vld [vmem:[%s1230 + $0x8] sm:$0xff]
        %v1233 = vld [vmem:[%s1230 + $0x10] sm:$0xff]
        %v1234 = vld [vmem:[%s1230 + $0x18] sm:$0xff]
        %v1235 = vld [vmem:[%s1230 + $0x20] sm:$0xff]
        %v1236 = vld [vmem:[%s1230 + $0x28] sm:$0xff]
        %v1237 = vld [vmem:[%s1230 + $0x30] sm:$0xff]
        %v1238 = vld [vmem:[%s1230 + $0x38] sm:$0xff]
        %v1239 = vld [vmem:[%s1230 + $0x40] sm:$0xff]
        %v1240 = vld [vmem:[%s1230 + $0x48] sm:$0xff]
        %v1241 = vld [vmem:[%s1230 + $0x50] sm:$0xff]
        %v1242 = vld [vmem:[%s1230 + $0x58] sm:$0xff]
        %v1243 = vld [vmem:[%s1230 + $0x60] sm:$0xff]
        %v1244 = vld [vmem:[%s1230 + $0x68] sm:$0xff]
        %v1245 = vld [vmem:[%s1230 + $0x70] sm:$0xff]
        %v1246 = vld [vmem:[%s1230 + $0x78] sm:$0xff]
        %1247 = vmatprep.subr.mxu0 0.0
        %1248 = vmatpush1.msra.mxu0 %v1246
        %1249 = vmatprep.subr.mxu0 0.0
        %1250 = vmatpush1.msra.mxu0 %v1245
        %1251 = vmatprep.subr.mxu0 0.0
        %1252 = vmatpush1.msra.mxu0 %v1244
        %1253 = vmatprep.subr.mxu0 0.0
        %1254 = vmatpush1.msra.mxu0 %v1243
        %1255 = vmatprep.subr.mxu0 0.0
        %1256 = vmatpush1.msra.mxu0 %v1242
        %1257 = vmatprep.subr.mxu0 0.0
        %1258 = vmatpush1.msra.mxu0 %v1241
        %1259 = vmatprep.subr.mxu0 0.0
        %1260 = vmatpush1.msra.mxu0 %v1240
        %1261 = vmatprep.subr.mxu0 0.0
        %1262 = vmatpush1.msra.mxu0 %v1239
        %1263 = vmatprep.subr.mxu0 0.0
        %1264 = vmatpush1.msra.mxu0 %v1238
        %1265 = vmatprep.subr.mxu0 0.0
        %1266 = vmatpush1.msra.mxu0 %v1237
        %1267 = vmatprep.subr.mxu0 0.0
        %1268 = vmatpush1.msra.mxu0 %v1236
        %1269 = vmatprep.subr.mxu0 0.0
        %1270 = vmatpush1.msra.mxu0 %v1235
        %1271 = vmatprep.subr.mxu0 0.0
        %1272 = vmatpush1.msra.mxu0 %v1234
        %1273 = vmatprep.subr.mxu0 0.0
        %1274 = vmatpush1.msra.mxu0 %v1233
        %1275 = vmatprep.subr.mxu0 0.0
        %1276 = vmatpush1.msra.mxu0 %v1232
        %1277 = vmatprep.subr.mxu0 0.0
        %1278 = vmatpush1.msra.mxu0 %v1231
        %1279 = vmatprep.subr.mxu0 0.0
        %1280 = vmatpush2.msra.mxu0 0.0
        %1281 = vmatprep.subr.mxu0 0.0
        %1282 = vmatpush2.msra.mxu0 0.0
        %1283 = vmatprep.subr.mxu0 0.0
        %1284 = vmatpush2.msra.mxu0 0.0
        %1285 = vmatprep.subr.mxu0 0.0
        %1286 = vmatpush2.msra.mxu0 0.0
        %1287 = vmatprep.subr.mxu0 0.0
        %1288 = vmatpush2.msra.mxu0 0.0
        %1289 = vmatprep.subr.mxu0 0.0
        %1290 = vmatpush2.msra.mxu0 0.0
        %1291 = vmatprep.subr.mxu0 0.0
        %1292 = vmatpush2.msra.mxu0 0.0
        %1293 = vmatprep.subr.mxu0 0.0
        %1294 = vmatpush2.msra.mxu0 0.0
        %1295 = vmatprep.subr.mxu0 0.0
        %1296 = vmatpush2.msra.mxu0 0.0
        %1297 = vmatprep.subr.mxu0 0.0
        %1298 = vmatpush2.msra.mxu0 0.0
        %1299 = vmatprep.subr.mxu0 0.0
        %1300 = vmatpush2.msra.mxu0 0.0
        %1301 = vmatprep.subr.mxu0 0.0
        %1302 = vmatpush2.msra.mxu0 0.0
        %1303 = vmatprep.subr.mxu0 0.0
        %1304 = vmatpush2.msra.mxu0 0.0
        %1305 = vmatprep.subr.mxu0 0.0
        %1306 = vmatpush2.msra.mxu0 0.0
        %1307 = vmatprep.subr.mxu0 0.0
        %1308 = vmatpush2.msra.mxu0 0.0
        %1309 = vmatprep.subr.mxu0 0.0
        %1310 = vmatpush2.msra.mxu0 0.0
        %1311 = vmatprep.mubr.f32.mxu0 0.0
        %1312 = vmatmul.mubr.f32.gmra.mxu0 %v1228
        %v1313 = vpop.f32.mrf.mxu0
        %v1314 = vadd.f32 0.0, %v1313
        %v1315 = vpop.f32.mrf.mxu0
        %1316 = vmatprep.mubr.f32.mxu0 0.0
        %1317 = vmatmul.mubr.f32.gmra.mxu0 %v1229
        %v1318 = vpop.f32.mrf.mxu0
        %v1319 = vadd.f32 0.0, %v1318
        %v1320 = vpop.f32.mrf.mxu0
        %1321 = vdwg.mxu0
        %v1322 = vadd.f32 %v1226, %v1314
        %v1323 = vadd.f32 %v1227, %v1319
        %v1324 = vld [vmem:[#allocation3 + $0x2] sm:$0xff]
        %v1325 = vld [vmem:[#allocation3 + $0xa] sm:$0xff]
        %s1326 = scalar_lea.vmem %s3, 256
        %v1327 = vld [vmem:[%s1326] sm:$0xff]
        %v1328 = vld [vmem:[%s1326 + $0x8] sm:$0xff]
        %v1329 = vld [vmem:[%s1326 + $0x10] sm:$0xff]
        %v1330 = vld [vmem:[%s1326 + $0x18] sm:$0xff]
        %v1331 = vld [vmem:[%s1326 + $0x20] sm:$0xff]
        %v1332 = vld [vmem:[%s1326 + $0x28] sm:$0xff]
        %v1333 = vld [vmem:[%s1326 + $0x30] sm:$0xff]
        %v1334 = vld [vmem:[%s1326 + $0x38] sm:$0xff]
        %v1335 = vld [vmem:[%s1326 + $0x40] sm:$0xff]
        %v1336 = vld [vmem:[%s1326 + $0x48] sm:$0xff]
        %v1337 = vld [vmem:[%s1326 + $0x50] sm:$0xff]
        %v1338 = vld [vmem:[%s1326 + $0x58] sm:$0xff]
        %v1339 = vld [vmem:[%s1326 + $0x60] sm:$0xff]
        %v1340 = vld [vmem:[%s1326 + $0x68] sm:$0xff]
        %v1341 = vld [vmem:[%s1326 + $0x70] sm:$0xff]
        %v1342 = vld [vmem:[%s1326 + $0x78] sm:$0xff]
        %1343 = vmatprep.subr.mxu0 0.0
        %1344 = vmatpush1.msra.mxu0 %v1342
        %1345 = vmatprep.subr.mxu0 0.0
        %1346 = vmatpush1.msra.mxu0 %v1341
        %1347 = vmatprep.subr.mxu0 0.0
        %1348 = vmatpush1.msra.mxu0 %v1340
        %1349 = vmatprep.subr.mxu0 0.0
        %1350 = vmatpush1.msra.mxu0 %v1339
        %1351 = vmatprep.subr.mxu0 0.0
        %1352 = vmatpush1.msra.mxu0 %v1338
        %1353 = vmatprep.subr.mxu0 0.0
        %1354 = vmatpush1.msra.mxu0 %v1337
        %1355 = vmatprep.subr.mxu0 0.0
        %1356 = vmatpush1.msra.mxu0 %v1336
        %1357 = vmatprep.subr.mxu0 0.0
        %1358 = vmatpush1.msra.mxu0 %v1335
        %1359 = vmatprep.subr.mxu0 0.0
        %1360 = vmatpush1.msra.mxu0 %v1334
        %1361 = vmatprep.subr.mxu0 0.0
        %1362 = vmatpush1.msra.mxu0 %v1333
        %1363 = vmatprep.subr.mxu0 0.0
        %1364 = vmatpush1.msra.mxu0 %v1332
        %1365 = vmatprep.subr.mxu0 0.0
        %1366 = vmatpush1.msra.mxu0 %v1331
        %1367 = vmatprep.subr.mxu0 0.0
        %1368 = vmatpush1.msra.mxu0 %v1330
        %1369 = vmatprep.subr.mxu0 0.0
        %1370 = vmatpush1.msra.mxu0 %v1329
        %1371 = vmatprep.subr.mxu0 0.0
        %1372 = vmatpush1.msra.mxu0 %v1328
        %1373 = vmatprep.subr.mxu0 0.0
        %1374 = vmatpush1.msra.mxu0 %v1327
        %1375 = vmatprep.subr.mxu0 0.0
        %1376 = vmatpush2.msra.mxu0 0.0
        %1377 = vmatprep.subr.mxu0 0.0
        %1378 = vmatpush2.msra.mxu0 0.0
        %1379 = vmatprep.subr.mxu0 0.0
        %1380 = vmatpush2.msra.mxu0 0.0
        %1381 = vmatprep.subr.mxu0 0.0
        %1382 = vmatpush2.msra.mxu0 0.0
        %1383 = vmatprep.subr.mxu0 0.0
        %1384 = vmatpush2.msra.mxu0 0.0
        %1385 = vmatprep.subr.mxu0 0.0
        %1386 = vmatpush2.msra.mxu0 0.0
        %1387 = vmatprep.subr.mxu0 0.0
        %1388 = vmatpush2.msra.mxu0 0.0
        %1389 = vmatprep.subr.mxu0 0.0
        %1390 = vmatpush2.msra.mxu0 0.0
        %1391 = vmatprep.subr.mxu0 0.0
        %1392 = vmatpush2.msra.mxu0 0.0
        %1393 = vmatprep.subr.mxu0 0.0
        %1394 = vmatpush2.msra.mxu0 0.0
        %1395 = vmatprep.subr.mxu0 0.0
        %1396 = vmatpush2.msra.mxu0 0.0
        %1397 = vmatprep.subr.mxu0 0.0
        %1398 = vmatpush2.msra.mxu0 0.0
        %1399 = vmatprep.subr.mxu0 0.0
        %1400 = vmatpush2.msra.mxu0 0.0
        %1401 = vmatprep.subr.mxu0 0.0
        %1402 = vmatpush2.msra.mxu0 0.0
        %1403 = vmatprep.subr.mxu0 0.0
        %1404 = vmatpush2.msra.mxu0 0.0
        %1405 = vmatprep.subr.mxu0 0.0
        %1406 = vmatpush2.msra.mxu0 0.0
        %1407 = vmatprep.mubr.f32.mxu0 0.0
        %1408 = vmatmul.mubr.f32.gmra.mxu0 %v1324
        %v1409 = vpop.f32.mrf.mxu0
        %v1410 = vadd.f32 0.0, %v1409
        %v1411 = vpop.f32.mrf.mxu0
        %1412 = vmatprep.mubr.f32.mxu0 0.0
        %1413 = vmatmul.mubr.f32.gmra.mxu0 %v1325
        %v1414 = vpop.f32.mrf.mxu0
        %v1415 = vadd.f32 0.0, %v1414
        %v1416 = vpop.f32.mrf.mxu0
        %1417 = vdwg.mxu0
        %v1418 = vadd.f32 %v1322, %v1410
        %v1419 = vadd.f32 %v1323, %v1415
        %v1420 = vadd.f32 %v1418, %v812
        %v1421 = vadd.f32 %v1419, %v813
        %vm1422 = vcmp.gt.f32.partialorder %v1420, 0.0
        %vm1423 = vcmp.gt.f32.partialorder %v1421, 0.0
        %v1424 = vstv %s1124
        %v1425 = vmul.f32 %v1424, %v1420
        %v1426 = vmul.f32 %v1424, %v1421
        %v1427 = vsel %vm1422, %v1420, %v1425
        %v1428 = vsel %vm1423, %v1421, %v1426
        %1429 = vst [vmem:[%s319] sm:$0xff] %v1427
        %1430 = vst [vmem:[%s319 + $0x8] sm:$0xff] %v1428
        %p1431 = scmp.lt.s32.totalorder %s20, 1
        %s1432 = scalar_select %p1431, %s20, 1
        %s1433 = smul.addr %s1432, 2
        %s1434 = smul.addr %s1433, 8
        %s1435 = scalar_lea.vmem %s8, %s1434
        // Predicated region
        $region57: #{batchnorm_block_forward.1} parent=51 // pred_check
          %p1436 = pneg %p211
        $region58: #{batchnorm_block_forward.1} parent=51 // pred_check_branch
          %1438 = sbr.rel (%p1436) target = $region60
        $region59: #{batchnorm_block_forward.1} parent=51 // pred_region
          _
        $region60: #{batchnorm_block_forward.1} parent=51 // pred_fallthru
          _
      $region52: #{batchnorm_block_forward.1} parent=5 // pred_fallthru
        _
      %p1439 = scmp.le.s32.totalorder 2, %s15
      // Predicated region
      $region61: #{batchnorm_block_forward.1} parent=5 // pred_check
        %p1440 = pneg %p1439
      $region62: #{batchnorm_block_forward.1} parent=5 // pred_check_branch
        %1442 = sbr.rel (%p1440) target = $region64
      $region63: #{batchnorm_block_forward.1} parent=5 // pred_region
        %s1443 = ssub.s32 %s15, 2
        // Predicated region
        $region65: #{batchnorm_block_forward.1} parent=63 // pred_check
          %p1444 = pneg %p217
        $region66: #{batchnorm_block_forward.1} parent=63 // pred_check_branch
          %1446 = sbr.rel (%p1444) target = $region68
        $region67: #{batchnorm_block_forward.1} parent=63 // pred_region
          %p1447 = scmp.lt.s32.totalorder %s21, 1
          %s1448 = scalar_select %p1447, %s21, 1
          %s1449 = smul.addr %s1448, 2
          %s1450 = smul.addr %s1449, 8
          %s1451 = scalar_lea.vmem %s8, %s1450
        $region68: #{batchnorm_block_forward.1} parent=63 // pred_fallthru
          _
      $region64: #{batchnorm_block_forward.1} parent=5 // pred_fallthru
        _
    $region6: #{batchnorm_block_forward.1} parent=1 // loop_footer
      %s19 = sadd.s32 1, %s15
    $region7: #{batchnorm_block_forward.1} parent=1 // loop_footer_branch
      %14 = sbr.rel target = $region3
    $region8: #{batchnorm_block_forward.1} parent=1 // loop_exit
      _
    %1452 = vsyncpa [#allocation5], 1
    %s1453 = scalar_lea.sflag [#allocation5], 1
    %1454 = vsyncpa %s1453, 1

</llo_original>
